<compile_context>
chip_gen: v5e
topology: v5e:2x2
jax: 0.10.0
libtpu: 0.0.40
codegen_flags: <defaults>
</compile_context>

<pallas_src>
import functools

import numpy as np
import jax
import jax.numpy as jnp
from jax import lax
from jax.experimental import pallas as pl
from jax.experimental.pallas import tpu as pltpu

GN_EPS = 1e-5                        # torch.nn.GroupNorm default eps
VMEM_LIMIT = 48 * 1024 * 1024        # > 32 MiB scoped default, < v7x 64 MiB


def _conv1x1_tile(x_ref, w_ref):
    # x_ref: (1, Cin, hw_tile) in the original NCHW layout (f32/bf16 in HBM);
    # cast to bf16 in-register, contract over Cin on the MXU (transposed-LHS
    # matmul) -> (hw_tile, Hd) f32.  No wrapper-side transpose round trip.
    return lax.dot_general(
        x_ref[0].astype(jnp.bfloat16), w_ref[...],
        dimension_numbers=(((0,), (0,)), ((), ())),
        preferred_element_type=jnp.float32)


# ----------------------------------------------------------------------------
# Pass 1: per-frame sum / sum-of-squares of y0 = x @ W over HW tiles
# ----------------------------------------------------------------------------
def _stats_kernel(x_ref, w_ref, s_ref, ss_ref):
    # s_ref / ss_ref: (1, 1, Hd) f32 resident accumulators (per frame)
    h = pl.program_id(1)
    y0 = _conv1x1_tile(x_ref, w_ref)                    # (hw_tile, Hd) f32
    s = jnp.sum(y0, axis=0, keepdims=True)              # (1, Hd)
    ss = jnp.sum(y0 * y0, axis=0, keepdims=True)        # (1, Hd)

    @pl.when(h == 0)
    def _():
        s_ref[0] = s
        ss_ref[0] = ss

    @pl.when(h != 0)
    def _():
        s_ref[0] += s
        ss_ref[0] += ss


def _stats_y_kernel(x_ref, w_ref, s_ref, ss_ref, y_ref):
    # Same as _stats_kernel but also materializes y0 (bf16) to HBM so pass 2
    # needs no matmul / no second read of x (used when Cin > Hd).
    h = pl.program_id(1)
    y0 = _conv1x1_tile(x_ref, w_ref)
    y_ref[0] = y0.astype(y_ref.dtype)
    s = jnp.sum(y0, axis=0, keepdims=True)
    ss = jnp.sum(y0 * y0, axis=0, keepdims=True)

    @pl.when(h == 0)
    def _():
        s_ref[0] = s
        ss_ref[0] = ss

    @pl.when(h != 0)
    def _():
        s_ref[0] += s
        ss_ref[0] += ss


# ----------------------------------------------------------------------------
# Pass 2: folded GroupNorm scale/shift (bias included) + temporal max
# ----------------------------------------------------------------------------
def _norm_tmax_recompute_kernel(x_ref, w_ref, scale_ref, shift_ref, o_ref):
    # Recompute y0 = x @ W (cheap when Cin <= Hd).  scale/shift: (1, T, Hd)
    # per-clip blocks, resident across the whole (h, t) inner grid.
    t = pl.program_id(2)
    y0 = _conv1x1_tile(x_ref, w_ref)                    # (hw_tile, Hd) f32
    sc = scale_ref[0, pl.ds(t, 1), :]                   # (1, Hd)
    sh = shift_ref[0, pl.ds(t, 1), :]                   # (1, Hd)
    yn = (y0 * sc + sh).astype(o_ref.dtype)

    @pl.when(t == 0)
    def _():
        o_ref[0] = yn

    @pl.when(t != 0)
    def _():
        o_ref[0] = jnp.maximum(o_ref[0], yn)


def _norm_tmax_from_y_kernel(y_ref, scale_ref, shift_ref, o_ref):
    # Read the y0 materialized by pass 1 (used when Cin > Hd): no matmul.
    t = pl.program_id(2)
    y0 = y_ref[0].astype(jnp.float32)
    sc = scale_ref[0, pl.ds(t, 1), :]
    sh = shift_ref[0, pl.ds(t, 1), :]
    yn = (y0 * sc + sh).astype(o_ref.dtype)

    @pl.when(t == 0)
    def _():
        o_ref[0] = yn

    @pl.when(t != 0)
    def _():
        o_ref[0] = jnp.maximum(o_ref[0], yn)


# ----------------------------------------------------------------------------
# Wrapper: input_proj (conv1x1 + GroupNorm) + temporal max over num_frames
# ----------------------------------------------------------------------------
def _pick_hw_tile(hw, max_tile):
    if hw <= max_tile:
        return hw
    cands = [t for t in range(128, max_tile + 1, 128) if hw % t == 0]
    if cands:
        return max(cands)
    # TODO(synk): ragged H*W with no 128-multiple divisor falls back to a
    # single full-HW tile; pad spatially upstream for very large odd maps.
    return hw


@functools.partial(
    jax.jit,
    static_argnames=("num_frames", "num_groups", "hw_tile", "out_dtype",
                     "materialize_y"))
def input_proj_gn_tmax(feat_nchw, w, b, gamma, beta, *, num_frames,
                       num_groups=32, hw_tile=1024,
                       out_dtype=jnp.bfloat16, materialize_y=None):
    N, Cin, Hf, Wf = feat_nchw.shape
    T = num_frames
    B = N // T
    HW = Hf * Wf
    Hd = w.shape[1]
    G = num_groups
    cg = Hd // G
    if materialize_y is None:
        materialize_y = Cin > Hd          # deep backbone levels
    tile = _pick_hw_tile(HW, hw_tile)
    assert HW % tile == 0
    n_hw = HW // tile

    # NCHW kept as-is: free reshape only, no transpose / dtype HBM round trip.
    x = feat_nchw.reshape(N, Cin, HW)
    w_bf = w.astype(jnp.bfloat16)

    # ---- pass 1: per-frame sum / sum-of-squares of y0, HW tiled ------------
    x_spec1 = pl.BlockSpec((1, Cin, tile), lambda f, h: (f, 0, h))
    w_spec1 = pl.BlockSpec((Cin, Hd), lambda f, h: (0, 0))
    stat_spec = pl.BlockSpec((1, 1, Hd), lambda f, h: (f, 0, 0))
    stat_shape = jax.ShapeDtypeStruct((N, 1, Hd), jnp.float32)

    if materialize_y:
        out_shape1 = (stat_shape, stat_shape,
                      jax.ShapeDtypeStruct((N, HW, Hd), jnp.bfloat16))
        out_specs1 = (stat_spec, stat_spec,
                      pl.BlockSpec((1, tile, Hd), lambda f, h: (f, h, 0)))
        kernel1 = _stats_y_kernel
    else:
        out_shape1 = (stat_shape, stat_shape)
        out_specs1 = (stat_spec, stat_spec)
        kernel1 = _stats_kernel

    res1 = pl.pallas_call(
        kernel1,
        out_shape=out_shape1,
        grid_spec=pltpu.PrefetchScalarGridSpec(
            num_scalar_prefetch=0,
            grid=(N, n_hw),
            in_specs=[x_spec1, w_spec1],
            out_specs=out_specs1),
        compiler_params=pltpu.CompilerParams(
            dimension_semantics=("parallel", "arbitrary"),
            vmem_limit_bytes=VMEM_LIMIT),
    )(x, w_bf)
    if materialize_y:
        s0, ss0, y0 = res1
    else:
        s0, ss0 = res1
        y0 = None
    s0 = s0.reshape(N, Hd)
    ss0 = ss0.reshape(N, Hd)

    # ---- glue: derive GroupNorm stats of y = y0 + b analytically, fold the
    # conv bias + gamma/beta into a single per-frame scale/shift -------------
    bvec = b.reshape(1, Hd).astype(jnp.float32)
    gvec = gamma.reshape(1, Hd).astype(jnp.float32)
    bevec = beta.reshape(1, Hd).astype(jnp.float32)
    hw_f = float(HW)
    s_y = s0 + hw_f * bvec                                  # sum(y)   per chan
    ss_y = ss0 + 2.0 * bvec * s0 + hw_f * bvec * bvec       # sum(y^2) per chan
    cnt = float(HW * cg)
    mean_g = s_y.reshape(N, G, cg).sum(-1) / cnt
    ex2_g = ss_y.reshape(N, G, cg).sum(-1) / cnt
    var_g = jnp.maximum(ex2_g - mean_g * mean_g, 0.0)       # clamp (biased var)
    inv_g = lax.rsqrt(var_g + GN_EPS)
    mean_c = jnp.repeat(mean_g, cg, axis=-1)                # (N, Hd)
    inv_c = jnp.repeat(inv_g, cg, axis=-1)                  # (N, Hd)
    scale = (gvec * inv_c).astype(jnp.float32)              # applied to y0
    shift = (bevec + (bvec - mean_c) * gvec * inv_c).astype(jnp.float32)
    scale = scale.reshape(B, T, Hd)
    shift = shift.reshape(B, T, Hd)

    # ---- pass 2: normalize + temporal max; T innermost, output resident ----
    sc_spec = pl.BlockSpec((1, T, Hd), lambda bc, h, t: (bc, 0, 0))
    o_spec = pl.BlockSpec((1, tile, Hd), lambda bc, h, t: (bc, h, 0))
    cparams = pltpu.CompilerParams(
        dimension_semantics=("parallel", "parallel", "arbitrary"),
        vmem_limit_bytes=VMEM_LIMIT)

    if materialize_y:
        out = pl.pallas_call(
            _norm_tmax_from_y_kernel,
            out_shape=jax.ShapeDtypeStruct((B, HW, Hd), out_dtype),
            grid_spec=pltpu.PrefetchScalarGridSpec(
                num_scalar_prefetch=0,
                grid=(B, n_hw, T),
                in_specs=[
                    pl.BlockSpec((1, tile, Hd),
                                 lambda bc, h, t: (bc * T + t, h, 0)),
                    sc_spec, sc_spec,
                ],
                out_specs=o_spec),
            compiler_params=cparams,
        )(y0, scale, shift)
    else:
        out = pl.pallas_call(
            _norm_tmax_recompute_kernel,
            out_shape=jax.ShapeDtypeStruct((B, HW, Hd), out_dtype),
            grid_spec=pltpu.PrefetchScalarGridSpec(
                num_scalar_prefetch=0,
                grid=(B, n_hw, T),
                in_specs=[
                    pl.BlockSpec((1, Cin, tile),
                                 lambda bc, h, t: (bc * T + t, 0, h)),
                    pl.BlockSpec((Cin, Hd), lambda bc, h, t: (0, 0)),
                    sc_spec, sc_spec,
                ],
                out_specs=o_spec),
            compiler_params=cparams,
        )(x, w_bf, scale, shift)
    return out   # (B, H*W, Hd), channels-last


# ----------------------------------------------------------------------------
# Proposal boxes: cxcywh -> xyxy, scaled by images_whwh (plain JAX on purpose)
# ----------------------------------------------------------------------------
def scale_proposal_boxes(boxes_cxcywh, images_whwh):
    cx, cy, bw, bh = jnp.split(boxes_cxcywh, 4, axis=-1)
    xyxy = jnp.concatenate(
        [cx - 0.5 * bw, cy - 0.5 * bh, cx + 0.5 * bw, cy + 0.5 * bh], axis=-1)
    return xyxy[None, :, :] * images_whwh[:, None, :]


# ----------------------------------------------------------------------------
# Plain-JAX reference of the torch semantics (bf16-rounded x / weights)
# ----------------------------------------------------------------------------
def reference_src(feat_nchw, W, bconv, gamma, beta, B, T, G):
    N, Cin, Hf, Wf = feat_nchw.shape
    Hd = W.shape[1]
    x = feat_nchw.astype(jnp.bfloat16).astype(jnp.float32)
    Wf32 = W.astype(jnp.bfloat16).astype(jnp.float32)
    xl = jnp.transpose(x, (0, 2, 3, 1))                        # NHWC
    y = jnp.einsum('nhwc,cd->nhwd', xl, Wf32) + bconv          # 1x1 conv
    y = y.reshape(N, Hf * Wf, G, Hd // G)
    mean = y.mean(axis=(1, 3), keepdims=True)
    var = ((y - mean) ** 2).mean(axis=(1, 3), keepdims=True)
    yn = (y - mean) / jnp.sqrt(var + GN_EPS)
    yn = yn.reshape(N, Hf * Wf, Hd) * gamma + beta
    yn = yn.reshape(B, T, Hf * Wf, Hd)
    return jnp.max(yn, axis=1)                                  # (B, HW, Hd)


if __name__ == "__main__":
    # small config consistent with the module's __init__
    B, T = 2, 2              # clips, num_frames (TEMP_LEN)
    Cin, Hf, Wf = 4, 16, 16  # backbone feature channels / spatial
    Hd = 128                 # HIDDEN_DIM (lane-dense; 256 in production)
    G = 32                   # GroupNorm(32, hidden_dim)
    P = 8                    # NUM_PROPOSALS
    img_h, img_w = 64, 64    # padded image size

    key = jax.random.PRNGKey(0)
    k1, k2, k3, k4 = jax.random.split(key, 4)

    # "backbone" feature for the single ROI_HEADS.IN_FEATURES level, NCHW
    feat = jax.random.normal(k1, (B * T, Cin, Hf, Wf), jnp.float32)
    # input_proj parameters (1x1 conv + GroupNorm defaults)
    Wconv = jax.random.normal(k2, (Cin, Hd), jnp.float32) * 0.1
    bconv = jax.random.normal(k3, (Hd,), jnp.float32) * 0.01
    gamma = jnp.ones((Hd,), jnp.float32)
    beta = jnp.zeros((Hd,), jnp.float32)
    # init_proposal_boxes: constant (0.5, 0.5, 1.0, 1.0), as in __init__
    init_boxes = jnp.concatenate(
        [jnp.full((P, 2), 0.5, jnp.float32), jnp.ones((P, 2), jnp.float32)],
        axis=1)
    # init_proposal_features (would feed DynamicHead)
    init_feats = jax.random.normal(k4, (P, Hd), jnp.float32)

    ref = reference_src(feat, Wconv, bconv, gamma, beta, B, T, G)

    # srcs[0]: input_proj + GroupNorm + temporal max, f32 output (tight check)
    src_f32 = jax.block_until_ready(
        input_proj_gn_tmax(feat, Wconv, bconv, gamma, beta,
                           num_frames=T, num_groups=G,
                           out_dtype=jnp.float32))
    assert np.allclose(np.asarray(src_f32), np.asarray(ref),
                       atol=3e-3, rtol=3e-3)

    # default bf16 output (halved pass-2 HBM writeback)
    src_bf16 = jax.block_until_ready(
        input_proj_gn_tmax(feat, Wconv, bconv, gamma, beta,
                           num_frames=T, num_groups=G))
    assert np.allclose(np.asarray(src_bf16.astype(jnp.float32)),
                       np.asarray(ref), atol=3e-2, rtol=3e-2)

    # materialize-y path (the Cin > Hd deep-level structure), forced here
    src_mat = jax.block_until_ready(
        input_proj_gn_tmax(feat, Wconv, bconv, gamma, beta,
                           num_frames=T, num_groups=G,
                           out_dtype=jnp.float32, materialize_y=True))
    assert np.allclose(np.asarray(src_mat), np.asarray(ref),
                       atol=2e-2, rtol=2e-2)

    # images_whwh_creator: per-batch [w, h, w, h]
    whwh = jnp.tile(jnp.array([[img_w, img_h, img_w, img_h]], jnp.float32),
                    (B, 1))
    prop = jax.block_until_ready(scale_proposal_boxes(init_boxes, whwh))
    xyxy = jnp.stack([init_boxes[:, 0] - init_boxes[:, 2] / 2,
                      init_boxes[:, 1] - init_boxes[:, 3] / 2,
                      init_boxes[:, 0] + init_boxes[:, 2] / 2,
                      init_boxes[:, 1] + init_boxes[:, 3] / 2], axis=-1)
    ref_prop = xyxy[None] * whwh[:, None, :]
    assert np.allclose(np.asarray(prop), np.asarray(ref_prop), atol=1e-4)

    # NCHW-parity view of the projected / temporally-maxed feature (srcs[0])
    srcs_nchw = jnp.transpose(src_f32.reshape(B, Hf, Wf, Hd), (0, 3, 1, 2))
    _ = jax.block_until_ready(srcs_nchw)

    # TODO(synk): backbone and DynamicHead (RoIAlign + iterative dynamic-conv
    # heads) are external modules whose source is not in the reference file;
    # pred_logits / pred_boxes are therefore not reproduced here.
    print("KERNEL_OK")
</pallas_src>

<mosaic_0001>
module attributes {stable_mosaic.version = 11 : i64} {
  func.func @_stats_kernel(%arg0: i32, %arg1: i32, %arg2: memref<1x4x256xf32, #tpu.memory_space<vmem>>, %arg3: memref<4x128xbf16, #tpu.memory_space<vmem>>, %arg4: memref<1x1x128xf32, #tpu.memory_space<vmem>>, %arg5: memref<1x1x128xf32, #tpu.memory_space<vmem>>) attributes {dimension_semantics = [#tpu.dimension_semantics<parallel>, #tpu.dimension_semantics<arbitrary>], iteration_bounds = array<i64: 4, 1>, scalar_prefetch = 0 : i64, scratch_operands = 0 : i64, tpu.core_type = #tpu.core_type<tc>, window_params = [{transform_indices = @transform_0, window_bounds = array<i64: 1, 4, 256>}, {pipeline_mode = #tpu.pipeline_mode<synchronous>, transform_indices = @transform_1, window_bounds = array<i64: 4, 128>}, {transform_indices = @transform_2, window_bounds = array<i64: 1, 1, 128>}, {transform_indices = @transform_3, window_bounds = array<i64: 1, 1, 128>}]} {
    %c0 = arith.constant 0 : index
    %c0_0 = arith.constant 0 : index
    %c0_1 = arith.constant 0 : index
    %0 = vector.load %arg2[%c0, %c0_0, %c0_1] : memref<1x4x256xf32, #tpu.memory_space<vmem>>, vector<1x4x256xf32>
    %1 = vector.shape_cast %0 : vector<1x4x256xf32> to vector<4x256xf32>
    %2 = arith.truncf %1 : vector<4x256xf32> to vector<4x256xbf16>
    %c0_2 = arith.constant 0 : index
    %c0_3 = arith.constant 0 : index
    %3 = vector.load %arg3[%c0_2, %c0_3] : memref<4x128xbf16, #tpu.memory_space<vmem>>, vector<4x128xbf16>
    %cst = arith.constant dense<0.000000e+00> : vector<256x128xf32>
    %4 = tpu.matmul %2, %3, %cst {dimension_numbers = #tpu.dot_dimension_numbers<[0], [0], [1], [1], [0, 1, 1, 1], [], []>} : vector<4x256xbf16>, vector<4x128xbf16>, vector<256x128xf32> -> vector<256x128xf32>
    %cst_4 = arith.constant dense<0.000000e+00> : vector<128xf32>
    %5 = vector.multi_reduction <add>, %4, %cst_4 [0] : vector<256x128xf32> to vector<128xf32>
    %6 = vector.shape_cast %5 : vector<128xf32> to vector<1x128xf32>
    %7 = arith.mulf %4, %4 : vector<256x128xf32>
    %cst_5 = arith.constant dense<0.000000e+00> : vector<128xf32>
    %8 = vector.multi_reduction <add>, %7, %cst_5 [0] : vector<256x128xf32> to vector<128xf32>
    %9 = vector.shape_cast %8 : vector<128xf32> to vector<1x128xf32>
    %c0_i32 = arith.constant 0 : i32
    %10 = arith.cmpi eq, %arg1, %c0_i32 : i32
    %11 = arith.extui %10 : i1 to i32
    %c0_i32_6 = arith.constant 0 : i32
    %12 = arith.cmpi ne, %11, %c0_i32_6 : i32
    scf.if %12 {
      %c0_9 = arith.constant 0 : index
      %c0_10 = arith.constant 0 : index
      %c0_11 = arith.constant 0 : index
      %16 = vector.load %arg4[%c0_9, %c0_10, %c0_11] : memref<1x1x128xf32, #tpu.memory_space<vmem>>, vector<1x1x128xf32>
      %17 = vector.shape_cast %16 : vector<1x1x128xf32> to vector<1x128xf32>
      %18 = vector.shape_cast %6 : vector<1x128xf32> to vector<1x1x128xf32>
      tpu.vector_store %arg4[%c0_9, %c0_10, %c0_11], %18 {strides = array<i32>} : memref<1x1x128xf32, #tpu.memory_space<vmem>>, vector<1x1x128xf32>,
      %c0_12 = arith.constant 0 : index
      %c0_13 = arith.constant 0 : index
      %c0_14 = arith.constant 0 : index
      %19 = vector.load %arg5[%c0_12, %c0_13, %c0_14] : memref<1x1x128xf32, #tpu.memory_space<vmem>>, vector<1x1x128xf32>
      %20 = vector.shape_cast %19 : vector<1x1x128xf32> to vector<1x128xf32>
      %21 = vector.shape_cast %9 : vector<1x128xf32> to vector<1x1x128xf32>
      tpu.vector_store %arg5[%c0_12, %c0_13, %c0_14], %21 {strides = array<i32>} : memref<1x1x128xf32, #tpu.memory_space<vmem>>, vector<1x1x128xf32>,
    } else {
    }
    %c0_i32_7 = arith.constant 0 : i32
    %13 = arith.cmpi ne, %arg1, %c0_i32_7 : i32
    %14 = arith.extui %13 : i1 to i32
    %c0_i32_8 = arith.constant 0 : i32
    %15 = arith.cmpi ne, %14, %c0_i32_8 : i32
    scf.if %15 {
      %c0_9 = arith.constant 0 : index
      %c0_10 = arith.constant 0 : index
      %c0_11 = arith.constant 0 : index
      %16 = vector.load %arg4[%c0_9, %c0_10, %c0_11] : memref<1x1x128xf32, #tpu.memory_space<vmem>>, vector<1x1x128xf32>
      %17 = vector.shape_cast %16 : vector<1x1x128xf32> to vector<1x128xf32>
      %18 = arith.addf %17, %6 : vector<1x128xf32>
      %c0_12 = arith.constant 0 : index
      %c0_13 = arith.constant 0 : index
      %c0_14 = arith.constant 0 : index
      %19 = vector.load %arg4[%c0_12, %c0_13, %c0_14] : memref<1x1x128xf32, #tpu.memory_space<vmem>>, vector<1x1x128xf32>
      %20 = vector.shape_cast %19 : vector<1x1x128xf32> to vector<1x128xf32>
      %21 = vector.shape_cast %18 : vector<1x128xf32> to vector<1x1x128xf32>
      tpu.vector_store %arg4[%c0_12, %c0_13, %c0_14], %21 {strides = array<i32>} : memref<1x1x128xf32, #tpu.memory_space<vmem>>, vector<1x1x128xf32>,
      %c0_15 = arith.constant 0 : index
      %c0_16 = arith.constant 0 : index
      %c0_17 = arith.constant 0 : index
      %22 = vector.load %arg5[%c0_15, %c0_16, %c0_17] : memref<1x1x128xf32, #tpu.memory_space<vmem>>, vector<1x1x128xf32>
      %23 = vector.shape_cast %22 : vector<1x1x128xf32> to vector<1x128xf32>
      %24 = arith.addf %23, %9 : vector<1x128xf32>
      %c0_18 = arith.constant 0 : index
      %c0_19 = arith.constant 0 : index
      %c0_20 = arith.constant 0 : index
      %25 = vector.load %arg5[%c0_18, %c0_19, %c0_20] : memref<1x1x128xf32, #tpu.memory_space<vmem>>, vector<1x1x128xf32>
      %26 = vector.shape_cast %25 : vector<1x1x128xf32> to vector<1x128xf32>
      %27 = vector.shape_cast %24 : vector<1x128xf32> to vector<1x1x128xf32>
      tpu.vector_store %arg5[%c0_18, %c0_19, %c0_20], %27 {strides = array<i32>} : memref<1x1x128xf32, #tpu.memory_space<vmem>>, vector<1x1x128xf32>,
    } else {
    }
    return
  }
  func.func @transform_0(%arg0: i32, %arg1: i32) -> (i32, i32, i32) {
    %c0_i32 = arith.constant 0 : i32
    %c0_i32_0 = arith.constant 0 : i32
    return %arg0, %c0_i32, %arg1 : i32, i32, i32
  }
  func.func @transform_1(%arg0: i32, %arg1: i32) -> (i32, i32) {
    %c0_i32 = arith.constant 0 : i32
    %c0_i32_0 = arith.constant 0 : i32
    %c0_i32_1 = arith.constant 0 : i32
    return %c0_i32, %c0_i32_0 : i32, i32
  }
  func.func @transform_2(%arg0: i32, %arg1: i32) -> (i32, i32, i32) {
    %c0_i32 = arith.constant 0 : i32
    %c0_i32_0 = arith.constant 0 : i32
    %c0_i32_1 = arith.constant 0 : i32
    return %arg0, %c0_i32, %c0_i32_0 : i32, i32, i32
  }
  func.func @transform_3(%arg0: i32, %arg1: i32) -> (i32, i32, i32) {
    %c0_i32 = arith.constant 0 : i32
    %c0_i32_0 = arith.constant 0 : i32
    %c0_i32_1 = arith.constant 0 : i32
    return %arg0, %c0_i32, %c0_i32_0 : i32, i32, i32
  }
}

module attributes {stable_mosaic.version = 11 : i64} {
  func.func @_norm_tmax_recompute_kernel(%arg0: i32, %arg1: i32, %arg2: i32, %arg3: memref<1x4x256xf32, #tpu.memory_space<vmem>>, %arg4: memref<4x128xbf16, #tpu.memory_space<vmem>>, %arg5: memref<1x2x128xf32, #tpu.memory_space<vmem>>, %arg6: memref<1x2x128xf32, #tpu.memory_space<vmem>>, %arg7: memref<1x256x128xf32, #tpu.memory_space<vmem>>) attributes {dimension_semantics = [#tpu.dimension_semantics<parallel>, #tpu.dimension_semantics<parallel>, #tpu.dimension_semantics<arbitrary>], iteration_bounds = array<i64: 2, 1, 2>, scalar_prefetch = 0 : i64, scratch_operands = 0 : i64, tpu.core_type = #tpu.core_type<tc>, window_params = [{transform_indices = @transform_0, window_bounds = array<i64: 1, 4, 256>}, {pipeline_mode = #tpu.pipeline_mode<synchronous>, transform_indices = @transform_1, window_bounds = array<i64: 4, 128>}, {transform_indices = @transform_2, window_bounds = array<i64: 1, 2, 128>}, {transform_indices = @transform_3, window_bounds = array<i64: 1, 2, 128>}, {transform_indices = @transform_4, window_bounds = array<i64: 1, 256, 128>}]} {
    %c0 = arith.constant 0 : index
    %c0_0 = arith.constant 0 : index
    %c0_1 = arith.constant 0 : index
    %0 = vector.load %arg3[%c0, %c0_0, %c0_1] : memref<1x4x256xf32, #tpu.memory_space<vmem>>, vector<1x4x256xf32>
    %1 = vector.shape_cast %0 : vector<1x4x256xf32> to vector<4x256xf32>
    %2 = arith.truncf %1 : vector<4x256xf32> to vector<4x256xbf16>
    %c0_2 = arith.constant 0 : index
    %c0_3 = arith.constant 0 : index
    %3 = vector.load %arg4[%c0_2, %c0_3] : memref<4x128xbf16, #tpu.memory_space<vmem>>, vector<4x128xbf16>
    %cst = arith.constant dense<0.000000e+00> : vector<256x128xf32>
    %4 = tpu.matmul %2, %3, %cst {dimension_numbers = #tpu.dot_dimension_numbers<[0], [0], [1], [1], [0, 1, 1, 1], [], []>} : vector<4x256xbf16>, vector<4x128xbf16>, vector<256x128xf32> -> vector<256x128xf32>
    %c0_4 = arith.constant 0 : index
    %5 = arith.index_cast %arg2 : i32 to index
    %c0_5 = arith.constant 0 : index
    %6 = vector.load %arg5[%c0_4, %5, %c0_5] : memref<1x2x128xf32, #tpu.memory_space<vmem>>, vector<1x1x128xf32>
    %7 = vector.shape_cast %6 : vector<1x1x128xf32> to vector<1x128xf32>
    %c0_6 = arith.constant 0 : index
    %8 = arith.index_cast %arg2 : i32 to index
    %c0_7 = arith.constant 0 : index
    %9 = vector.load %arg6[%c0_6, %8, %c0_7] : memref<1x2x128xf32, #tpu.memory_space<vmem>>, vector<1x1x128xf32>
    %10 = vector.shape_cast %9 : vector<1x1x128xf32> to vector<1x128xf32>
    %11 = vector.broadcast %7 : vector<1x128xf32> to vector<256x128xf32>
    %12 = arith.mulf %4, %11 : vector<256x128xf32>
    %13 = vector.broadcast %10 : vector<1x128xf32> to vector<256x128xf32>
    %14 = arith.addf %12, %13 : vector<256x128xf32>
    %c0_i32 = arith.constant 0 : i32
    %15 = arith.cmpi eq, %arg2, %c0_i32 : i32
    %16 = arith.extui %15 : i1 to i32
    %c0_i32_8 = arith.constant 0 : i32
    %17 = arith.cmpi ne, %16, %c0_i32_8 : i32
    scf.if %17 {
      %c0_11 = arith.constant 0 : index
      %c0_12 = arith.constant 0 : index
      %c0_13 = arith.constant 0 : index
      %21 = vector.load %arg7[%c0_11, %c0_12, %c0_13] : memref<1x256x128xf32, #tpu.memory_space<vmem>>, vector<1x256x128xf32>
      %22 = vector.shape_cast %21 : vector<1x256x128xf32> to vector<256x128xf32>
      %23 = vector.shape_cast %14 : vector<256x128xf32> to vector<1x256x128xf32>
      tpu.vector_store %arg7[%c0_11, %c0_12, %c0_13], %23 {strides = array<i32>} : memref<1x256x128xf32, #tpu.memory_space<vmem>>, vector<1x256x128xf32>,
    } else {
    }
    %c0_i32_9 = arith.constant 0 : i32
    %18 = arith.cmpi ne, %arg2, %c0_i32_9 : i32
    %19 = arith.extui %18 : i1 to i32
    %c0_i32_10 = arith.constant 0 : i32
    %20 = arith.cmpi ne, %19, %c0_i32_10 : i32
    scf.if %20 {
      %c0_11 = arith.constant 0 : index
      %c0_12 = arith.constant 0 : index
      %c0_13 = arith.constant 0 : index
      %21 = vector.load %arg7[%c0_11, %c0_12, %c0_13] : memref<1x256x128xf32, #tpu.memory_space<vmem>>, vector<1x256x128xf32>
      %22 = vector.shape_cast %21 : vector<1x256x128xf32> to vector<256x128xf32>
      %23 = arith.maximumf %22, %14 : vector<256x128xf32>
      %c0_14 = arith.constant 0 : index
      %c0_15 = arith.constant 0 : index
      %c0_16 = arith.constant 0 : index
      %24 = vector.load %arg7[%c0_14, %c0_15, %c0_16] : memref<1x256x128xf32, #tpu.memory_space<vmem>>, vector<1x256x128xf32>
      %25 = vector.shape_cast %24 : vector<1x256x128xf32> to vector<256x128xf32>
      %26 = vector.shape_cast %23 : vector<256x128xf32> to vector<1x256x128xf32>
      tpu.vector_store %arg7[%c0_14, %c0_15, %c0_16], %26 {strides = array<i32>} : memref<1x256x128xf32, #tpu.memory_space<vmem>>, vector<1x256x128xf32>,
    } else {
    }
    return
  }
  func.func @transform_0(%arg0: i32, %arg1: i32, %arg2: i32) -> (i32, i32, i32) {
    %c2_i32 = arith.constant 2 : i32
    %0 = arith.muli %arg0, %c2_i32 : i32
    %1 = arith.addi %0, %arg2 : i32
    %c0_i32 = arith.constant 0 : i32
    %c0_i32_0 = arith.constant 0 : i32
    return %1, %c0_i32, %arg1 : i32, i32, i32
  }
  func.func @transform_1(%arg0: i32, %arg1: i32, %arg2: i32) -> (i32, i32) {
    %c0_i32 = arith.constant 0 : i32
    %c0_i32_0 = arith.constant 0 : i32
    %c0_i32_1 = arith.constant 0 : i32
    return %c0_i32, %c0_i32_0 : i32, i32
  }
  func.func @transform_2(%arg0: i32, %arg1: i32, %arg2: i32) -> (i32, i32, i32) {
    %c0_i32 = arith.constant 0 : i32
    %c0_i32_0 = arith.constant 0 : i32
    %c0_i32_1 = arith.constant 0 : i32
    return %arg0, %c0_i32, %c0_i32_0 : i32, i32, i32
  }
  func.func @transform_3(%arg0: i32, %arg1: i32, %arg2: i32) -> (i32, i32, i32) {
    %c0_i32 = arith.constant 0 : i32
    %c0_i32_0 = arith.constant 0 : i32
    %c0_i32_1 = arith.constant 0 : i32
    return %arg0, %c0_i32, %c0_i32_0 : i32, i32, i32
  }
  func.func @transform_4(%arg0: i32, %arg1: i32, %arg2: i32) -> (i32, i32, i32) {
    %c0_i32 = arith.constant 0 : i32
    %c0_i32_0 = arith.constant 0 : i32
    return %arg0, %arg1, %c0_i32 : i32, i32, i32
  }
}

</mosaic_0001>

<llo_original>
// kernel: input_proj_gn_tmax.2
$region0: #{input_proj_gn_tmax.2}
  #allocation0 [shape = 'u32[]', space=smem, size = 0x4, offset = 0x4, fixed_abs, tag = 'smem constant byte address 0x4 - core index']
  #allocation1 [shape = 'u32[72,128]{1,0:T(1,128)}', space=vmem, size = 0x9000, scoped, tag = 'internal scratch']
  %s0 = inlined_call_operand.vmem [shape: f32[4,4,256], index: 0, kind: input, shape index: {}]
  %s1 = inlined_call_operand.vmem [shape: bf16[4,128], index: 1, kind: input, shape index: {}]
  %s2 = inlined_call_operand.vmem [shape: f32[4,1,128], index: 2, kind: output, shape index: {0}]
  %s3 = inlined_call_operand.vmem [shape: f32[4,1,128], index: 3, kind: output, shape index: {1}]
  %4 = xla_tuple %s2, %s3
  %s5 = sld [smem:[#allocation0]]
  $region57: #{input_proj_gn_tmax.2} parent=0
    _
  %s7 = ssub.s32 1, %s5
  %s8 = scalar_select 0, %s7, %s5
  loop: start=0, step=1, limit=6
  $region2: #{input_proj_gn_tmax.2} parent=0 // loop_pre_header
    _
  $region3: #{input_proj_gn_tmax.2} parent=0 // loop_header
    %s10 = sphi 0, %s14
    %p11 = scmp.ge.s32.totalorder %s10, 6
    %s17 = sphi 0, %s29
    %s18 = sphi 0, %s25
    %s19 = sphi 0, %s17
    %s20 = sphi 0, %s18
    %s21 = sphi 0, %s19
    %s22 = sphi 0, %s20
    %s34 = sphi 0, %s36
    %s37 = sphi 0, %s34
    %s38 = sphi 0, %s37
    %s54 = sphi 0, %s38
    %s58 = sphi 0, %s58
    %s60 = sphi 0, %s58
    %s61 = sphi 0, %s60
    %s75 = sphi 0, %s61
    %s81 = sphi 0, %s83
    %s84 = sphi 0, %s81
    %s85 = sphi 0, %s84
    %s101 = sphi 0, %s85
    %s107 = sphi 0, %s109
    %s110 = sphi 0, %s107
    %s111 = sphi 0, %s110
    %s127 = sphi 0, %s111
  $region4: #{input_proj_gn_tmax.2} parent=0 // loop_header_branch
    %13 = sbr.rel (%p11) target = $region8
  $region5: #{input_proj_gn_tmax.2} parent=0 // loop_body
    %s15 = ssub.s32 %s10, 1
    %s16 = ssub.s32 %s10, 2
    %s23 = sadd.s32 1, %s18
    %p24 = scmp.ge.s32.totalorder %s23, 1
    %s25 = scalar_select %p24, 0, %s23
    %s26 = sadd.s32 1, %s17
    %s27 = scalar_select %p24, %s26, %s17
    %p28 = scmp.ge.s32.totalorder %s27, 4
    %s29 = scalar_select %p28, 0, %s27
    %s30 = ssub.s32 %s17, %s29
    %s31 = ssub.s32 %s18, %s25
    %s32 = sor.u32 %s30, %s31
    %p33 = scmp.eq.s32.totalorder %s32, 0
    %s35 = sadd.s32 %s34, 1
    %s36 = scalar_select %p33, %s34, %s35
    %p39 = pneg %p33
    %p40 = scmp.eq.s32.totalorder %s10, 3
    %p41 = por %p39, %p40
    %p42 = scmp.ne.s32.totalorder %s34, %s37
    %p43 = scmp.eq.s32.totalorder %s10, 0
    %p44 = por %p42, %p43
    %p45 = scmp.ne.s32.totalorder %s34, %s37
    %p46 = scmp.eq.s32.totalorder %s15, 3
    %p47 = por %p45, %p46
    %p48 = scmp.ne.s32.totalorder %s37, %s38
    %p49 = scmp.eq.s32.totalorder %s15, 0
    %p50 = por %p48, %p49
    %p51 = scmp.ne.s32.totalorder %s37, %s38
    %p52 = scmp.eq.s32.totalorder %s16, 3
    %p53 = por %p51, %p52
    %p55 = scmp.ne.s32.totalorder %s38, %s54
    %p56 = scmp.eq.s32.totalorder %s16, 0
    %p57 = por %p55, %p56
    %s59 = sadd.s32 %s58, 1
    %p62 = scmp.eq.s32.totalorder %s10, 3
    %p63 = scmp.ne.s32.totalorder %s58, %s60
    %p64 = scmp.eq.s32.totalorder %s10, 0
    %p65 = por %p63, %p64
    %p66 = scmp.ne.s32.totalorder %s58, %s60
    %p67 = scmp.eq.s32.totalorder %s15, 3
    %p68 = por %p66, %p67
    %p69 = scmp.ne.s32.totalorder %s60, %s61
    %p70 = scmp.eq.s32.totalorder %s15, 0
    %p71 = por %p69, %p70
    %p72 = scmp.ne.s32.totalorder %s60, %s61
    %p73 = scmp.eq.s32.totalorder %s16, 3
    %p74 = por %p72, %p73
    %p76 = scmp.ne.s32.totalorder %s61, %s75
    %p77 = scmp.eq.s32.totalorder %s16, 0
    %p78 = por %p76, %p77
    %s79 = ssub.s32 %s17, %s29
    %p80 = scmp.eq.s32.totalorder %s79, 0
    %s82 = sadd.s32 %s81, 1
    %s83 = scalar_select %p80, %s81, %s82
    %p86 = pneg %p80
    %p87 = scmp.eq.s32.totalorder %s10, 3
    %p88 = por %p86, %p87
    %p89 = scmp.ne.s32.totalorder %s81, %s84
    %p90 = scmp.eq.s32.totalorder %s10, 0
    %p91 = por %p89, %p90
    %p92 = scmp.ne.s32.totalorder %s81, %s84
    %p93 = scmp.eq.s32.totalorder %s15, 3
    %p94 = por %p92, %p93
    %p95 = scmp.ne.s32.totalorder %s84, %s85
    %p96 = scmp.eq.s32.totalorder %s15, 0
    %p97 = por %p95, %p96
    %p98 = scmp.ne.s32.totalorder %s84, %s85
    %p99 = scmp.eq.s32.totalorder %s16, 3
    %p100 = por %p98, %p99
    %p102 = scmp.ne.s32.totalorder %s85, %s101
    %p103 = scmp.eq.s32.totalorder %s16, 0
    %p104 = por %p102, %p103
    %s105 = ssub.s32 %s17, %s29
    %p106 = scmp.eq.s32.totalorder %s105, 0
    %s108 = sadd.s32 %s107, 1
    %s109 = scalar_select %p106, %s107, %s108
    %p112 = pneg %p106
    %p113 = scmp.eq.s32.totalorder %s10, 3
    %p114 = por %p112, %p113
    %p115 = scmp.ne.s32.totalorder %s107, %s110
    %p116 = scmp.eq.s32.totalorder %s10, 0
    %p117 = por %p115, %p116
    %p118 = scmp.ne.s32.totalorder %s107, %s110
    %p119 = scmp.eq.s32.totalorder %s15, 3
    %p120 = por %p118, %p119
    %p121 = scmp.ne.s32.totalorder %s110, %s111
    %p122 = scmp.eq.s32.totalorder %s15, 0
    %p123 = por %p121, %p122
    %p124 = scmp.ne.s32.totalorder %s110, %s111
    %p125 = scmp.eq.s32.totalorder %s16, 3
    %p126 = por %p124, %p125
    %p128 = scmp.ne.s32.totalorder %s111, %s127
    %p129 = scmp.eq.s32.totalorder %s16, 0
    %p130 = por %p128, %p129
    %p131 = scmp.le.s32.totalorder 1, %s10
    %p132 = scmp.lt.s32.totalorder %s10, 5
    %p133 = pnand %p131, %p132
    %p134 = pneg %p133
    // Predicated region
    $region9: #{input_proj_gn_tmax.2} parent=5 // pred_check
      _
    $region10: #{input_proj_gn_tmax.2} parent=5 // pred_check_branch
      %136 = sbr.rel (%p133) target = $region12
    $region11: #{input_proj_gn_tmax.2} parent=5 // pred_region
      %s137 = ssub.s32 %s10, 1
      // Predicated region
      $region13: #{input_proj_gn_tmax.2} parent=11 // pred_check
        %p138 = pneg %p71
      $region14: #{input_proj_gn_tmax.2} parent=11 // pred_check_branch
        %140 = sbr.rel (%p138) target = $region16
      $region15: #{input_proj_gn_tmax.2} parent=11 // pred_region
        _
      $region16: #{input_proj_gn_tmax.2} parent=11 // pred_fallthru
        _
    $region12: #{input_proj_gn_tmax.2} parent=5 // pred_fallthru
      _
    %p141 = scmp.lt.s32.totalorder %s10, 4
    // Predicated region
    $region17: #{input_proj_gn_tmax.2} parent=5 // pred_check
      %p142 = pneg %p141
    $region18: #{input_proj_gn_tmax.2} parent=5 // pred_check_branch
      %144 = sbr.rel (%p142) target = $region20
    $region19: #{input_proj_gn_tmax.2} parent=5 // pred_region
      // Predicated region
      $region21: #{input_proj_gn_tmax.2} parent=19 // pred_check
        %p145 = pneg %p44
      $region22: #{input_proj_gn_tmax.2} parent=19 // pred_check_branch
        %147 = sbr.rel (%p145) target = $region24
      $region23: #{input_proj_gn_tmax.2} parent=19 // pred_region
        %s148 = smul.u32 2, %s18
        %p149 = scmp.lt.s32.totalorder %s17, 3
        %s150 = scalar_select %p149, %s17, 3
        %p151 = scmp.lt.s32.totalorder %s148, 1
        %s152 = scalar_select %p151, %s148, 1
        %s153 = smul.addr %s150, 2
        %s154 = sadd.s32 %s152, %s153
        %s155 = smul.addr %s154, 4
        %s156 = scalar_lea.vmem %s0, %s155
        %s157 = smul.u32 2, %s18
      $region24: #{input_proj_gn_tmax.2} parent=19 // pred_fallthru
        _
    $region20: #{input_proj_gn_tmax.2} parent=5 // pred_fallthru
      _
    %p158 = scmp.le.s32.totalorder 1, %s10
    %p159 = scmp.lt.s32.totalorder %s10, 5
    %p160 = pnand %p158, %p159
    %p161 = pneg %p160
    // Predicated region
    $region25: #{input_proj_gn_tmax.2} parent=5 // pred_check
      _
    $region26: #{input_proj_gn_tmax.2} parent=5 // pred_check_branch
      %163 = sbr.rel (%p160) target = $region28
    $region27: #{input_proj_gn_tmax.2} parent=5 // pred_region
      %s164 = ssub.s32 %s10, 1
      %s165 = smul.u32 2, %s20
      %p166 = scmp.lt.s32.totalorder %s19, 3
      %s167 = scalar_select %p166, %s19, 3
      %p168 = scmp.lt.s32.totalorder %s165, 1
      %s169 = scalar_select %p168, %s165, 1
      %s170 = smul.addr %s167, 2
      %s171 = sadd.s32 %s169, %s170
      %s172 = smul.addr %s171, 4
      %s173 = scalar_lea.vmem %s0, %s172
      %p174 = pneg %p50
      %p175 = pneg %p47
      %p176 = pneg %p71
      %p177 = pneg %p68
      %p178 = pneg %p97
      %p179 = pneg %p94
      %p180 = scmp.lt.s32.totalorder %s19, 3
      %s181 = scalar_select %p180, %s19, 3
      %s182 = scalar_lea.vmem %s2, %s181
      %p183 = pneg %p123
      %p184 = pneg %p120
      %p185 = scmp.lt.s32.totalorder %s19, 3
      %s186 = scalar_select %p185, %s19, 3
      %s187 = scalar_lea.vmem %s3, %s186
      %s188 = smul.u32 2, %s20
      %p189 = scmp.lt.s32.totalorder %s19, 3
      %s190 = scalar_select %p189, %s19, 3
      %p191 = scmp.lt.s32.totalorder %s188, 1
      %s192 = scalar_select %p191, %s188, 1
      %s193 = smul.addr %s190, 2
      %s194 = sadd.s32 %s192, %s193
      %s195 = smul.addr %s194, 4
      %s196 = scalar_lea.vmem %s0, %s195
      %s197 = smul.u32 2, %s20
      %p198 = scmp.lt.s32.totalorder %s19, 3
      %s199 = scalar_select %p198, %s19, 3
      %s200 = scalar_lea.vmem %s2, %s199
      %p201 = scmp.lt.s32.totalorder %s19, 3
      %s202 = scalar_select %p201, %s19, 3
      %s203 = scalar_lea.vmem %s3, %s202
      %v205 = vld [vmem:[%s196] sm:$0xff]
      %207 = vst [vmem:[#allocation1] ss:$2 sm:$0xff] %v205
      %v208 = vld.sshfl [vmem:[#allocation1] sm:$0xff pattern:$0x75316420]
      %v209 = vld.sshfl [vmem:[#allocation1 + $0x8] sm:$0xff pattern:$0x75316420]
      %v212 = vpack.c.bf16 %v208, %v208
      %v213 = vpack.c.bf16 %v209, %v209
      %v214 = vld [vmem:[%s1] sm:$0x3]
      %215 = vxpose.binary.xlu0.c.b16.start [1/16] %v213, %v212, 128
      %216 = vxpose.binary.xlu0.c.b16.cont [2/16] 0, 0, 128
      %217 = vxpose.binary.xlu0.c.b16.cont [3/16] 0, 0, 128
      %218 = vxpose.binary.xlu0.c.b16.cont [4/16] 0, 0, 128
      %219 = vxpose.binary.xlu0.c.b16.cont [5/16] 0, 0, 128
      %220 = vxpose.binary.xlu0.c.b16.cont [6/16] 0, 0, 128
      %221 = vxpose.binary.xlu0.c.b16.cont [7/16] 0, 0, 128
      %222 = vxpose.binary.xlu0.c.b16.end [8/16] 0, 0, 128
      %v223 = vpop.trf.xlu0
      %v224 = vpop.trf.xlu0
      %v225 = vpop.trf.xlu0
      %v226 = vpop.trf.xlu0
      %v227 = vpop.trf.xlu0
      %v228 = vpop.trf.xlu0
      %v229 = vpop.trf.xlu0
      %v230 = vpop.trf.xlu0
      %v231 = vpop.trf.xlu0
      %v232 = vpop.trf.xlu0
      %v233 = vpop.trf.xlu0
      %v234 = vpop.trf.xlu0
      %v235 = vpop.trf.xlu0
      %v236 = vpop.trf.xlu0
      %v237 = vpop.trf.xlu0
      %v238 = vpop.trf.xlu0
      %vm239 = vcmask 31744
      %v241 = vsel %vm239, %v223, 0
      %v244 = vsel %vm239, %v225, 0
      %v247 = vsel %vm239, %v227, 0
      %v250 = vsel %vm239, %v229, 0
      %v253 = vsel %vm239, %v231, 0
      %v256 = vsel %vm239, %v233, 0
      %v259 = vsel %vm239, %v235, 0
      %v262 = vsel %vm239, %v237, 0
      %v265 = vsel %vm239, %v224, 0
      %v268 = vsel %vm239, %v226, 0
      %v271 = vsel %vm239, %v228, 0
      %v274 = vsel %vm239, %v230, 0
      %v277 = vsel %vm239, %v232, 0
      %v280 = vsel %vm239, %v234, 0
      %v283 = vsel %vm239, %v236, 0
      %v286 = vsel %vm239, %v238, 0
      %vm288 = vcmask 1041408
      %v290 = vsel %vm288, %v214, 0
      %292 = vmatpush.bf16.msra.mxu0 0
      %293 = vmatpush.bf16.msra.mxu0 0
      %294 = vmatpush.bf16.msra.mxu0 0
      %295 = vmatpush.bf16.msra.mxu0 0
      %296 = vmatpush.bf16.msra.mxu0 0
      %297 = vmatpush.bf16.msra.mxu0 0
      %298 = vmatpush.bf16.msra.mxu0 0
      %299 = vmatpush.bf16.msra.mxu0 %v290
      %300 = vmatmul.bf16.gmra.mxu0 %v241
      %v301 = vpop.f32.mrf.mxu0
      %v302 = vadd.f32 0.0, %v301
      %v303 = vpop.f32.mrf.mxu0
      %v304 = vadd.f32 0.0, %v303
      %305 = vmatmul.bf16.gmra.mxu0 %v244
      %v306 = vpop.f32.mrf.mxu0
      %v307 = vadd.f32 0.0, %v306
      %v308 = vpop.f32.mrf.mxu0
      %v309 = vadd.f32 0.0, %v308
      %310 = vmatmul.bf16.gmra.mxu0 %v247
      %v311 = vpop.f32.mrf.mxu0
      %v312 = vadd.f32 0.0, %v311
      %v313 = vpop.f32.mrf.mxu0
      %v314 = vadd.f32 0.0, %v313
      %315 = vmatmul.bf16.gmra.mxu0 %v250
      %v316 = vpop.f32.mrf.mxu0
      %v317 = vadd.f32 0.0, %v316
      %v318 = vpop.f32.mrf.mxu0
      %v319 = vadd.f32 0.0, %v318
      %320 = vmatmul.bf16.gmra.mxu0 %v253
      %v321 = vpop.f32.mrf.mxu0
      %v322 = vadd.f32 0.0, %v321
      %v323 = vpop.f32.mrf.mxu0
      %v324 = vadd.f32 0.0, %v323
      %325 = vmatmul.bf16.gmra.mxu0 %v256
      %v326 = vpop.f32.mrf.mxu0
      %v327 = vadd.f32 0.0, %v326
      %v328 = vpop.f32.mrf.mxu0
      %v329 = vadd.f32 0.0, %v328
      %330 = vmatmul.bf16.gmra.mxu0 %v259
      %v331 = vpop.f32.mrf.mxu0
      %v332 = vadd.f32 0.0, %v331
      %v333 = vpop.f32.mrf.mxu0
      %v334 = vadd.f32 0.0, %v333
      %335 = vmatmul.bf16.gmra.mxu0 %v262
      %v336 = vpop.f32.mrf.mxu0
      %v337 = vadd.f32 0.0, %v336
      %v338 = vpop.f32.mrf.mxu0
      %v339 = vadd.f32 0.0, %v338
      %340 = vmatmul.bf16.gmra.mxu0 %v265
      %v341 = vpop.f32.mrf.mxu0
      %v342 = vadd.f32 0.0, %v341
      %v343 = vpop.f32.mrf.mxu0
      %v344 = vadd.f32 0.0, %v343
      %345 = vmatmul.bf16.gmra.mxu0 %v268
      %v346 = vpop.f32.mrf.mxu0
      %v347 = vadd.f32 0.0, %v346
      %v348 = vpop.f32.mrf.mxu0
      %v349 = vadd.f32 0.0, %v348
      %350 = vmatmul.bf16.gmra.mxu0 %v271
      %v351 = vpop.f32.mrf.mxu0
      %v352 = vadd.f32 0.0, %v351
      %v353 = vpop.f32.mrf.mxu0
      %v354 = vadd.f32 0.0, %v353
      %355 = vmatmul.bf16.gmra.mxu0 %v274
      %v356 = vpop.f32.mrf.mxu0
      %v357 = vadd.f32 0.0, %v356
      %v358 = vpop.f32.mrf.mxu0
      %v359 = vadd.f32 0.0, %v358
      %360 = vmatmul.bf16.gmra.mxu0 %v277
      %v361 = vpop.f32.mrf.mxu0
      %v362 = vadd.f32 0.0, %v361
      %v363 = vpop.f32.mrf.mxu0
      %v364 = vadd.f32 0.0, %v363
      %365 = vmatmul.bf16.gmra.mxu0 %v280
      %v366 = vpop.f32.mrf.mxu0
      %v367 = vadd.f32 0.0, %v366
      %v368 = vpop.f32.mrf.mxu0
      %v369 = vadd.f32 0.0, %v368
      %370 = vmatmul.bf16.gmra.mxu0 %v283
      %v371 = vpop.f32.mrf.mxu0
      %v372 = vadd.f32 0.0, %v371
      %v373 = vpop.f32.mrf.mxu0
      %v374 = vadd.f32 0.0, %v373
      %375 = vmatmul.bf16.gmra.mxu0 %v286
      %v376 = vpop.f32.mrf.mxu0
      %v377 = vadd.f32 0.0, %v376
      %v378 = vpop.f32.mrf.mxu0
      %v379 = vadd.f32 0.0, %v378
      %380 = vdwg.mxu0
      %v381 = vadd.f32 %v302, %v304
      %v382 = vadd.f32 %v381, %v307
      %v383 = vadd.f32 %v382, %v309
      %v384 = vadd.f32 %v383, %v312
      %v385 = vadd.f32 %v384, %v314
      %v386 = vadd.f32 %v385, %v317
      %v387 = vadd.f32 %v386, %v319
      %v388 = vadd.f32 %v387, %v322
      %v389 = vadd.f32 %v388, %v324
      %v390 = vadd.f32 %v389, %v327
      %v391 = vadd.f32 %v390, %v329
      %v392 = vadd.f32 %v391, %v332
      %v393 = vadd.f32 %v392, %v334
      %v394 = vadd.f32 %v393, %v337
      %v395 = vadd.f32 %v394, %v339
      %v396 = vadd.f32 %v395, %v342
      %v397 = vadd.f32 %v396, %v344
      %v398 = vadd.f32 %v397, %v347
      %v399 = vadd.f32 %v398, %v349
      %v400 = vadd.f32 %v399, %v352
      %v401 = vadd.f32 %v400, %v354
      %v402 = vadd.f32 %v401, %v357
      %v403 = vadd.f32 %v402, %v359
      %v404 = vadd.f32 %v403, %v362
      %v405 = vadd.f32 %v404, %v364
      %v406 = vadd.f32 %v405, %v367
      %v407 = vadd.f32 %v406, %v369
      %v408 = vadd.f32 %v407, %v372
      %v409 = vadd.f32 %v408, %v374
      %v410 = vadd.f32 %v409, %v377
      %v411 = vadd.f32 %v410, %v379
      %v412 = vrot.slane %v411, 4
      %v413 = vadd.f32 %v411, %v412
      %v414 = vrot.slane %v413, 2
      %v415 = vadd.f32 %v413, %v414
      %v416 = vrot.slane %v415, 1
      %v417 = vadd.f32 %v415, %v416
      %v418 = vmul.f32 %v302, %v302
      %v419 = vmul.f32 %v304, %v304
      %v420 = vmul.f32 %v307, %v307
      %v421 = vmul.f32 %v309, %v309
      %v422 = vmul.f32 %v312, %v312
      %v423 = vmul.f32 %v314, %v314
      %v424 = vmul.f32 %v317, %v317
      %v425 = vmul.f32 %v319, %v319
      %v426 = vmul.f32 %v322, %v322
      %v427 = vmul.f32 %v324, %v324
      %v428 = vmul.f32 %v327, %v327
      %v429 = vmul.f32 %v329, %v329
      %v430 = vmul.f32 %v332, %v332
      %v431 = vmul.f32 %v334, %v334
      %v432 = vmul.f32 %v337, %v337
      %v433 = vmul.f32 %v339, %v339
      %v434 = vmul.f32 %v342, %v342
      %v435 = vmul.f32 %v344, %v344
      %v436 = vmul.f32 %v347, %v347
      %v437 = vmul.f32 %v349, %v349
      %v438 = vmul.f32 %v352, %v352
      %v439 = vmul.f32 %v354, %v354
      %v440 = vmul.f32 %v357, %v357
      %v441 = vmul.f32 %v359, %v359
      %v442 = vmul.f32 %v362, %v362
      %v443 = vmul.f32 %v364, %v364
      %v444 = vmul.f32 %v367, %v367
      %v445 = vmul.f32 %v369, %v369
      %v446 = vmul.f32 %v372, %v372
      %v447 = vmul.f32 %v374, %v374
      %v448 = vmul.f32 %v377, %v377
      %v449 = vmul.f32 %v379, %v379
      %v450 = vadd.f32 %v418, %v419
      %v451 = vadd.f32 %v450, %v420
      %v452 = vadd.f32 %v451, %v421
      %v453 = vadd.f32 %v452, %v422
      %v454 = vadd.f32 %v453, %v423
      %v455 = vadd.f32 %v454, %v424
      %v456 = vadd.f32 %v455, %v425
      %v457 = vadd.f32 %v456, %v426
      %v458 = vadd.f32 %v457, %v427
      %v459 = vadd.f32 %v458, %v428
      %v460 = vadd.f32 %v459, %v429
      %v461 = vadd.f32 %v460, %v430
      %v462 = vadd.f32 %v461, %v431
      %v463 = vadd.f32 %v462, %v432
      %v464 = vadd.f32 %v463, %v433
      %v465 = vadd.f32 %v464, %v434
      %v466 = vadd.f32 %v465, %v435
      %v467 = vadd.f32 %v466, %v436
      %v468 = vadd.f32 %v467, %v437
      %v469 = vadd.f32 %v468, %v438
      %v470 = vadd.f32 %v469, %v439
      %v471 = vadd.f32 %v470, %v440
      %v472 = vadd.f32 %v471, %v441
      %v473 = vadd.f32 %v472, %v442
      %v474 = vadd.f32 %v473, %v443
      %v475 = vadd.f32 %v474, %v444
      %v476 = vadd.f32 %v475, %v445
      %v477 = vadd.f32 %v476, %v446
      %v478 = vadd.f32 %v477, %v447
      %v479 = vadd.f32 %v478, %v448
      %v480 = vadd.f32 %v479, %v449
      %v481 = vrot.slane %v480, 4
      %v482 = vadd.f32 %v480, %v481
      %v483 = vrot.slane %v482, 2
      %v484 = vadd.f32 %v482, %v483
      %v485 = vrot.slane %v484, 1
      %v486 = vadd.f32 %v484, %v485
      %p487 = scmp.eq.s32.totalorder %s20, 0
      // Predicated region
      $region29: #{input_proj_gn_tmax.2} parent=27 // pred_check
        %p488 = pneg %p487
      $region30: #{input_proj_gn_tmax.2} parent=27 // pred_check_branch
        %490 = sbr.rel (%p488) target = $region32
      $region31: #{input_proj_gn_tmax.2} parent=27 // pred_region
        %491 = vst [vmem:[%s200] sm:$0x1] %v417
        %492 = vst [vmem:[%s203] sm:$0x1] %v486
      $region32: #{input_proj_gn_tmax.2} parent=27 // pred_fallthru
        _
      %p493 = scmp.ne.s32.totalorder %s20, 0
      // Predicated region
      $region33: #{input_proj_gn_tmax.2} parent=27 // pred_check
        %p494 = pneg %p493
      $region34: #{input_proj_gn_tmax.2} parent=27 // pred_check_branch
        %496 = sbr.rel (%p494) target = $region36
      $region35: #{input_proj_gn_tmax.2} parent=27 // pred_region
        %v497 = vld [vmem:[%s200] sm:$0x1]
        %v498 = vadd.f32 %v497, %v417
        %499 = vst [vmem:[%s200] sm:$0x1] %v498
        %v500 = vld [vmem:[%s203] sm:$0x1]
        %v501 = vadd.f32 %v500, %v486
        %502 = vst [vmem:[%s203] sm:$0x1] %v501
      $region36: #{input_proj_gn_tmax.2} parent=27 // pred_fallthru
        _
      %p503 = scmp.lt.s32.totalorder %s19, 3
      %s504 = scalar_select %p503, %s19, 3
      %s505 = scalar_lea.vmem %s2, %s504
      %p506 = scmp.lt.s32.totalorder %s19, 3
      %s507 = scalar_select %p506, %s19, 3
      %s508 = scalar_lea.vmem %s3, %s507
      // Predicated region
      $region37: #{input_proj_gn_tmax.2} parent=27 // pred_check
        %p509 = pneg %p94
      $region38: #{input_proj_gn_tmax.2} parent=27 // pred_check_branch
        %511 = sbr.rel (%p509) target = $region40
      $region39: #{input_proj_gn_tmax.2} parent=27 // pred_region
        _
      $region40: #{input_proj_gn_tmax.2} parent=27 // pred_fallthru
        _
      // Predicated region
      $region41: #{input_proj_gn_tmax.2} parent=27 // pred_check
        %p512 = pneg %p120
      $region42: #{input_proj_gn_tmax.2} parent=27 // pred_check_branch
        %514 = sbr.rel (%p512) target = $region44
      $region43: #{input_proj_gn_tmax.2} parent=27 // pred_region
        _
      $region44: #{input_proj_gn_tmax.2} parent=27 // pred_fallthru
        _
    $region28: #{input_proj_gn_tmax.2} parent=5 // pred_fallthru
      _
    %p515 = scmp.le.s32.totalorder 2, %s10
    // Predicated region
    $region45: #{input_proj_gn_tmax.2} parent=5 // pred_check
      %p516 = pneg %p515
    $region46: #{input_proj_gn_tmax.2} parent=5 // pred_check_branch
      %518 = sbr.rel (%p516) target = $region48
    $region47: #{input_proj_gn_tmax.2} parent=5 // pred_region
      %s519 = ssub.s32 %s10, 2
      // Predicated region
      $region49: #{input_proj_gn_tmax.2} parent=47 // pred_check
        %p520 = pneg %p100
      $region50: #{input_proj_gn_tmax.2} parent=47 // pred_check_branch
        %522 = sbr.rel (%p520) target = $region52
      $region51: #{input_proj_gn_tmax.2} parent=47 // pred_region
        %p523 = scmp.lt.s32.totalorder %s21, 3
        %s524 = scalar_select %p523, %s21, 3
        %s525 = scalar_lea.vmem %s2, %s524
      $region52: #{input_proj_gn_tmax.2} parent=47 // pred_fallthru
        _
      // Predicated region
      $region53: #{input_proj_gn_tmax.2} parent=47 // pred_check
        %p526 = pneg %p126
      $region54: #{input_proj_gn_tmax.2} parent=47 // pred_check_branch
        %528 = sbr.rel (%p526) target = $region56
      $region55: #{input_proj_gn_tmax.2} parent=47 // pred_region
        %p529 = scmp.lt.s32.totalorder %s21, 3
        %s530 = scalar_select %p529, %s21, 3
        %s531 = scalar_lea.vmem %s3, %s530
      $region56: #{input_proj_gn_tmax.2} parent=47 // pred_fallthru
        _
    $region48: #{input_proj_gn_tmax.2} parent=5 // pred_fallthru
      _
  $region6: #{input_proj_gn_tmax.2} parent=0 // loop_footer
    %s14 = sadd.s32 1, %s10
  $region7: #{input_proj_gn_tmax.2} parent=0 // loop_footer_branch
    %9 = sbr.rel target = $region3
  $region8: #{input_proj_gn_tmax.2} parent=0 // loop_exit
    _

// kernel: input_proj_gn_tmax.3
$region0: #{input_proj_gn_tmax.3}
  #allocation0 [shape = 'u32[]', space=smem, size = 0x4, offset = 0x4, fixed_abs, tag = 'smem constant byte address 0x4 - core index']
  #allocation1 [shape = 'u32[72,128]{1,0:T(1,128)}', space=vmem, size = 0x9000, scoped, tag = 'internal scratch']
  %s0 = inlined_call_operand.vmem [shape: f32[4,4,256], index: 0, kind: input, shape index: {}]
  %s1 = inlined_call_operand.vmem [shape: bf16[4,128], index: 1, kind: input, shape index: {}]
  %s2 = inlined_call_operand.vmem [shape: f32[2,2,128], index: 2, kind: input, shape index: {}]
  %s3 = inlined_call_operand.vmem [shape: f32[2,2,128], index: 3, kind: input, shape index: {}]
  %s4 = inlined_call_operand.hbm [shape: f32[2,256,128], index: 4, kind: output, shape index: {}]
  %s5 = sld [smem:[#allocation0]]
  $region57: #{input_proj_gn_tmax.3} parent=0
    _
  %s7 = ssub.s32 1, %s5
  %s8 = scalar_select 0, %s7, %s5
  $region1: #{input_proj_gn_tmax.3} parent=0
    #allocation2 [shape = 'u8[262144]{0}', space=vmem, size = 0x40000, scoped, tag = 'output window, operand 0']
    #allocation3 [shape = 's32[2]{0}', space=sflag, size = 0x8, scoped, tag = 'scoped memory for input_proj_gn_tmax.3']
    %9 = vsyncpa [#allocation3], 0
    %s10 = scalar_lea.sflag [#allocation3], 1
    %11 = vsyncpa %s10, 0
    loop: start=0, step=1, limit=6
    $region2: #{input_proj_gn_tmax.3} parent=1 // loop_pre_header
      _
    $region3: #{input_proj_gn_tmax.3} parent=1 // loop_header
      %s13 = sphi 0, %s17
      %p14 = scmp.ge.s32.totalorder %s13, 6
      %s20 = sphi 0, %s39
      %s21 = sphi 0, %s35
      %s22 = sphi 0, %s31
      %s23 = sphi 0, %s20
      %s24 = sphi 0, %s21
      %s25 = sphi 0, %s22
      %s26 = sphi 0, %s23
      %s27 = sphi 0, %s24
      %s28 = sphi 0, %s25
      %s48 = sphi 0, %s50
      %s51 = sphi 0, %s48
      %s52 = sphi 0, %s51
      %s68 = sphi 0, %s52
      %s72 = sphi 0, %s72
      %s74 = sphi 0, %s72
      %s75 = sphi 0, %s74
      %s89 = sphi 0, %s75
      %s95 = sphi 0, %s97
      %s98 = sphi 0, %s95
      %s99 = sphi 0, %s98
      %s115 = sphi 0, %s99
      %s121 = sphi 0, %s123
      %s124 = sphi 0, %s121
      %s125 = sphi 0, %s124
      %s141 = sphi 0, %s125
      %s149 = sphi 0, %s151
      %s152 = sphi 0, %s149
      %s153 = sphi 0, %s152
      %s169 = sphi 0, %s153
    $region4: #{input_proj_gn_tmax.3} parent=1 // loop_header_branch
      %16 = sbr.rel (%p14) target = $region8
    $region5: #{input_proj_gn_tmax.3} parent=1 // loop_body
      %s18 = ssub.s32 %s13, 1
      %s19 = ssub.s32 %s13, 2
      %s29 = sadd.s32 1, %s22
      %p30 = scmp.ge.s32.totalorder %s29, 2
      %s31 = scalar_select %p30, 0, %s29
      %s32 = sadd.s32 1, %s21
      %s33 = scalar_select %p30, %s32, %s21
      %p34 = scmp.ge.s32.totalorder %s33, 1
      %s35 = scalar_select %p34, 0, %s33
      %s36 = sadd.s32 1, %s20
      %s37 = scalar_select %p34, %s36, %s20
      %p38 = scmp.ge.s32.totalorder %s37, 2
      %s39 = scalar_select %p38, 0, %s37
      %s40 = smul.u32 %s20, 2
      %s41 = sadd.s32 %s40, %s22
      %s42 = smul.u32 %s39, 2
      %s43 = sadd.s32 %s42, %s31
      %s44 = ssub.s32 %s41, %s43
      %s45 = ssub.s32 %s21, %s35
      %s46 = sor.u32 %s44, %s45
      %p47 = scmp.eq.s32.totalorder %s46, 0
      %s49 = sadd.s32 %s48, 1
      %s50 = scalar_select %p47, %s48, %s49
      %p53 = pneg %p47
      %p54 = scmp.eq.s32.totalorder %s13, 3
      %p55 = por %p53, %p54
      %p56 = scmp.ne.s32.totalorder %s48, %s51
      %p57 = scmp.eq.s32.totalorder %s13, 0
      %p58 = por %p56, %p57
      %p59 = scmp.ne.s32.totalorder %s48, %s51
      %p60 = scmp.eq.s32.totalorder %s18, 3
      %p61 = por %p59, %p60
      %p62 = scmp.ne.s32.totalorder %s51, %s52
      %p63 = scmp.eq.s32.totalorder %s18, 0
      %p64 = por %p62, %p63
      %p65 = scmp.ne.s32.totalorder %s51, %s52
      %p66 = scmp.eq.s32.totalorder %s19, 3
      %p67 = por %p65, %p66
      %p69 = scmp.ne.s32.totalorder %s52, %s68
      %p70 = scmp.eq.s32.totalorder %s19, 0
      %p71 = por %p69, %p70
      %s73 = sadd.s32 %s72, 1
      %p76 = scmp.eq.s32.totalorder %s13, 3
      %p77 = scmp.ne.s32.totalorder %s72, %s74
      %p78 = scmp.eq.s32.totalorder %s13, 0
      %p79 = por %p77, %p78
      %p80 = scmp.ne.s32.totalorder %s72, %s74
      %p81 = scmp.eq.s32.totalorder %s18, 3
      %p82 = por %p80, %p81
      %p83 = scmp.ne.s32.totalorder %s74, %s75
      %p84 = scmp.eq.s32.totalorder %s18, 0
      %p85 = por %p83, %p84
      %p86 = scmp.ne.s32.totalorder %s74, %s75
      %p87 = scmp.eq.s32.totalorder %s19, 3
      %p88 = por %p86, %p87
      %p90 = scmp.ne.s32.totalorder %s75, %s89
      %p91 = scmp.eq.s32.totalorder %s19, 0
      %p92 = por %p90, %p91
      %s93 = ssub.s32 %s20, %s39
      %p94 = scmp.eq.s32.totalorder %s93, 0
      %s96 = sadd.s32 %s95, 1
      %s97 = scalar_select %p94, %s95, %s96
      %p100 = pneg %p94
      %p101 = scmp.eq.s32.totalorder %s13, 3
      %p102 = por %p100, %p101
      %p103 = scmp.ne.s32.totalorder %s95, %s98
      %p104 = scmp.eq.s32.totalorder %s13, 0
      %p105 = por %p103, %p104
      %p106 = scmp.ne.s32.totalorder %s95, %s98
      %p107 = scmp.eq.s32.totalorder %s18, 3
      %p108 = por %p106, %p107
      %p109 = scmp.ne.s32.totalorder %s98, %s99
      %p110 = scmp.eq.s32.totalorder %s18, 0
      %p111 = por %p109, %p110
      %p112 = scmp.ne.s32.totalorder %s98, %s99
      %p113 = scmp.eq.s32.totalorder %s19, 3
      %p114 = por %p112, %p113
      %p116 = scmp.ne.s32.totalorder %s99, %s115
      %p117 = scmp.eq.s32.totalorder %s19, 0
      %p118 = por %p116, %p117
      %s119 = ssub.s32 %s20, %s39
      %p120 = scmp.eq.s32.totalorder %s119, 0
      %s122 = sadd.s32 %s121, 1
      %s123 = scalar_select %p120, %s121, %s122
      %p126 = pneg %p120
      %p127 = scmp.eq.s32.totalorder %s13, 3
      %p128 = por %p126, %p127
      %p129 = scmp.ne.s32.totalorder %s121, %s124
      %p130 = scmp.eq.s32.totalorder %s13, 0
      %p131 = por %p129, %p130
      %p132 = scmp.ne.s32.totalorder %s121, %s124
      %p133 = scmp.eq.s32.totalorder %s18, 3
      %p134 = por %p132, %p133
      %p135 = scmp.ne.s32.totalorder %s124, %s125
      %p136 = scmp.eq.s32.totalorder %s18, 0
      %p137 = por %p135, %p136
      %p138 = scmp.ne.s32.totalorder %s124, %s125
      %p139 = scmp.eq.s32.totalorder %s19, 3
      %p140 = por %p138, %p139
      %p142 = scmp.ne.s32.totalorder %s125, %s141
      %p143 = scmp.eq.s32.totalorder %s19, 0
      %p144 = por %p142, %p143
      %s145 = ssub.s32 %s20, %s39
      %s146 = ssub.s32 %s21, %s35
      %s147 = sor.u32 %s145, %s146
      %p148 = scmp.eq.s32.totalorder %s147, 0
      %s150 = sadd.s32 %s149, 1
      %s151 = scalar_select %p148, %s149, %s150
      %p154 = pneg %p148
      %p155 = scmp.eq.s32.totalorder %s13, 3
      %p156 = por %p154, %p155
      %p157 = scmp.ne.s32.totalorder %s149, %s152
      %p158 = scmp.eq.s32.totalorder %s13, 0
      %p159 = por %p157, %p158
      %p160 = scmp.ne.s32.totalorder %s149, %s152
      %p161 = scmp.eq.s32.totalorder %s18, 3
      %p162 = por %p160, %p161
      %p163 = scmp.ne.s32.totalorder %s152, %s153
      %p164 = scmp.eq.s32.totalorder %s18, 0
      %p165 = por %p163, %p164
      %p166 = scmp.ne.s32.totalorder %s152, %s153
      %p167 = scmp.eq.s32.totalorder %s19, 3
      %p168 = por %p166, %p167
      %p170 = scmp.ne.s32.totalorder %s153, %s169
      %p171 = scmp.eq.s32.totalorder %s19, 0
      %p172 = por %p170, %p171
      %p173 = scmp.le.s32.totalorder 1, %s13
      %p174 = scmp.lt.s32.totalorder %s13, 5
      %p175 = pnand %p173, %p174
      %p176 = pneg %p175
      // Predicated region
      $region9: #{input_proj_gn_tmax.3} parent=5 // pred_check
        _
      $region10: #{input_proj_gn_tmax.3} parent=5 // pred_check_branch
        %178 = sbr.rel (%p175) target = $region12
      $region11: #{input_proj_gn_tmax.3} parent=5 // pred_region
        %s179 = ssub.s32 %s13, 1
        // Predicated region
        $region13: #{input_proj_gn_tmax.3} parent=11 // pred_check
          %p180 = pneg %p85
        $region14: #{input_proj_gn_tmax.3} parent=11 // pred_check_branch
          %182 = sbr.rel (%p180) target = $region16
        $region15: #{input_proj_gn_tmax.3} parent=11 // pred_region
          _
        $region16: #{input_proj_gn_tmax.3} parent=11 // pred_fallthru
          _
      $region12: #{input_proj_gn_tmax.3} parent=5 // pred_fallthru
        _
      %p183 = scmp.lt.s32.totalorder %s13, 4
      // Predicated region
      $region17: #{input_proj_gn_tmax.3} parent=5 // pred_check
        %p184 = pneg %p183
      $region18: #{input_proj_gn_tmax.3} parent=5 // pred_check_branch
        %186 = sbr.rel (%p184) target = $region20
      $region19: #{input_proj_gn_tmax.3} parent=5 // pred_region
        // Predicated region
        $region21: #{input_proj_gn_tmax.3} parent=19 // pred_check
          %p187 = pneg %p58
        $region22: #{input_proj_gn_tmax.3} parent=19 // pred_check_branch
          %189 = sbr.rel (%p187) target = $region24
        $region23: #{input_proj_gn_tmax.3} parent=19 // pred_region
          %s190 = smul.u32 %s20, 2
          %s191 = sadd.s32 %s190, %s22
          %s192 = smul.u32 2, %s21
          %p193 = scmp.lt.s32.totalorder %s191, 3
          %s194 = scalar_select %p193, %s191, 3
          %p195 = scmp.lt.s32.totalorder %s192, 1
          %s196 = scalar_select %p195, %s192, 1
          %s197 = smul.addr %s194, 2
          %s198 = sadd.s32 %s196, %s197
          %s199 = smul.addr %s198, 4
          %s200 = scalar_lea.vmem %s0, %s199
          %s201 = smul.u32 %s20, 2
          %s202 = sadd.s32 %s201, %s22
          %s203 = smul.u32 2, %s21
        $region24: #{input_proj_gn_tmax.3} parent=19 // pred_fallthru
          _
        // Predicated region
        $region25: #{input_proj_gn_tmax.3} parent=19 // pred_check
          %p204 = pneg %p105
        $region26: #{input_proj_gn_tmax.3} parent=19 // pred_check_branch
          %206 = sbr.rel (%p204) target = $region28
        $region27: #{input_proj_gn_tmax.3} parent=19 // pred_region
          %p207 = scmp.lt.s32.totalorder %s20, 1
          %s208 = scalar_select %p207, %s20, 1
          %s209 = smul.addr %s208, 2
          %s210 = scalar_lea.vmem %s2, %s209
        $region28: #{input_proj_gn_tmax.3} parent=19 // pred_fallthru
          _
        // Predicated region
        $region29: #{input_proj_gn_tmax.3} parent=19 // pred_check
          %p211 = pneg %p131
        $region30: #{input_proj_gn_tmax.3} parent=19 // pred_check_branch
          %213 = sbr.rel (%p211) target = $region32
        $region31: #{input_proj_gn_tmax.3} parent=19 // pred_region
          %p214 = scmp.lt.s32.totalorder %s20, 1
          %s215 = scalar_select %p214, %s20, 1
          %s216 = smul.addr %s215, 2
          %s217 = scalar_lea.vmem %s3, %s216
        $region32: #{input_proj_gn_tmax.3} parent=19 // pred_fallthru
          _
      $region20: #{input_proj_gn_tmax.3} parent=5 // pred_fallthru
        _
      %p218 = scmp.le.s32.totalorder 1, %s13
      %p219 = scmp.lt.s32.totalorder %s13, 5
      %p220 = pnand %p218, %p219
      %p221 = pneg %p220
      // Predicated region
      $region33: #{input_proj_gn_tmax.3} parent=5 // pred_check
        _
      $region34: #{input_proj_gn_tmax.3} parent=5 // pred_check_branch
        %223 = sbr.rel (%p220) target = $region36
      $region35: #{input_proj_gn_tmax.3} parent=5 // pred_region
        %s224 = ssub.s32 %s13, 1
        %s225 = smul.u32 %s23, 2
        %s226 = sadd.s32 %s225, %s25
        %s227 = smul.u32 2, %s24
        %p228 = scmp.lt.s32.totalorder %s226, 3
        %s229 = scalar_select %p228, %s226, 3
        %p230 = scmp.lt.s32.totalorder %s227, 1
        %s231 = scalar_select %p230, %s227, 1
        %s232 = smul.addr %s229, 2
        %s233 = sadd.s32 %s231, %s232
        %s234 = smul.addr %s233, 4
        %s235 = scalar_lea.vmem %s0, %s234
        %p236 = pneg %p64
        %p237 = pneg %p61
        %p238 = pneg %p85
        %p239 = pneg %p82
        %p240 = scmp.lt.s32.totalorder %s23, 1
        %s241 = scalar_select %p240, %s23, 1
        %s242 = smul.addr %s241, 2
        %s243 = scalar_lea.vmem %s2, %s242
        %p244 = pneg %p111
        %p245 = pneg %p108
        %p246 = scmp.lt.s32.totalorder %s23, 1
        %s247 = scalar_select %p246, %s23, 1
        %s248 = smul.addr %s247, 2
        %s249 = scalar_lea.vmem %s3, %s248
        %p250 = pneg %p137
        %p251 = pneg %p134
        %p252 = pneg %p165
        %p253 = pneg %p162
        %s254 = sand.u32 %s152, 1
        %s255 = scalar_lea.sflag [#allocation3], %s254
        %s256 = sand.u32 %s152, 1
        %s257 = smul.addr %s256, 256
        %s258 = scalar_lea.vmem [#allocation2], %s257
        %s259 = smul.u32 %s23, 2
        %s260 = sadd.s32 %s259, %s25
        %s261 = smul.u32 2, %s24
        %p262 = scmp.lt.s32.totalorder %s260, 3
        %s263 = scalar_select %p262, %s260, 3
        %p264 = scmp.lt.s32.totalorder %s261, 1
        %s265 = scalar_select %p264, %s261, 1
        %s266 = smul.addr %s263, 2
        %s267 = sadd.s32 %s265, %s266
        %s268 = smul.addr %s267, 4
        %s269 = scalar_lea.vmem %s0, %s268
        %s270 = smul.u32 %s23, 2
        %s271 = sadd.s32 %s270, %s25
        %s272 = smul.u32 2, %s24
        %p273 = scmp.lt.s32.totalorder %s23, 1
        %s274 = scalar_select %p273, %s23, 1
        %s275 = smul.addr %s274, 2
        %s276 = scalar_lea.vmem %s2, %s275
        %p277 = scmp.lt.s32.totalorder %s23, 1
        %s278 = scalar_select %p277, %s23, 1
        %s279 = smul.addr %s278, 2
        %s280 = scalar_lea.vmem %s3, %s279
        %s281 = smul.u32 32, %s24
        %v283 = vld [vmem:[%s269] sm:$0xff]
        %285 = vst [vmem:[#allocation1] ss:$2 sm:$0xff] %v283
        %v286 = vld.sshfl [vmem:[#allocation1] sm:$0xff pattern:$0x75316420]
        %v287 = vld.sshfl [vmem:[#allocation1 + $0x8] sm:$0xff pattern:$0x75316420]
        %v290 = vpack.c.bf16 %v286, %v286
        %v291 = vpack.c.bf16 %v287, %v287
        %v292 = vld [vmem:[%s1] sm:$0x3]
        %293 = vxpose.binary.xlu0.c.b16.start [1/16] %v291, %v290, 128
        %294 = vxpose.binary.xlu0.c.b16.cont [2/16] 0, 0, 128
        %295 = vxpose.binary.xlu0.c.b16.cont [3/16] 0, 0, 128
        %296 = vxpose.binary.xlu0.c.b16.cont [4/16] 0, 0, 128
        %297 = vxpose.binary.xlu0.c.b16.cont [5/16] 0, 0, 128
        %298 = vxpose.binary.xlu0.c.b16.cont [6/16] 0, 0, 128
        %299 = vxpose.binary.xlu0.c.b16.cont [7/16] 0, 0, 128
        %300 = vxpose.binary.xlu0.c.b16.end [8/16] 0, 0, 128
        %v301 = vpop.trf.xlu0
        %v302 = vpop.trf.xlu0
        %v303 = vpop.trf.xlu0
        %v304 = vpop.trf.xlu0
        %v305 = vpop.trf.xlu0
        %v306 = vpop.trf.xlu0
        %v307 = vpop.trf.xlu0
        %v308 = vpop.trf.xlu0
        %v309 = vpop.trf.xlu0
        %v310 = vpop.trf.xlu0
        %v311 = vpop.trf.xlu0
        %v312 = vpop.trf.xlu0
        %v313 = vpop.trf.xlu0
        %v314 = vpop.trf.xlu0
        %v315 = vpop.trf.xlu0
        %v316 = vpop.trf.xlu0
        %vm317 = vcmask 31744
        %v319 = vsel %vm317, %v301, 0
        %v322 = vsel %vm317, %v303, 0
        %v325 = vsel %vm317, %v305, 0
        %v328 = vsel %vm317, %v307, 0
        %v331 = vsel %vm317, %v309, 0
        %v334 = vsel %vm317, %v311, 0
        %v337 = vsel %vm317, %v313, 0
        %v340 = vsel %vm317, %v315, 0
        %v343 = vsel %vm317, %v302, 0
        %v346 = vsel %vm317, %v304, 0
        %v349 = vsel %vm317, %v306, 0
        %v352 = vsel %vm317, %v308, 0
        %v355 = vsel %vm317, %v310, 0
        %v358 = vsel %vm317, %v312, 0
        %v361 = vsel %vm317, %v314, 0
        %v364 = vsel %vm317, %v316, 0
        %vm366 = vcmask 1041408
        %v368 = vsel %vm366, %v292, 0
        %370 = vmatpush.bf16.msra.mxu0 0
        %371 = vmatpush.bf16.msra.mxu0 0
        %372 = vmatpush.bf16.msra.mxu0 0
        %373 = vmatpush.bf16.msra.mxu0 0
        %374 = vmatpush.bf16.msra.mxu0 0
        %375 = vmatpush.bf16.msra.mxu0 0
        %376 = vmatpush.bf16.msra.mxu0 0
        %377 = vmatpush.bf16.msra.mxu0 %v368
        %378 = vmatmul.bf16.gmra.mxu0 %v319
        %v379 = vpop.f32.mrf.mxu0
        %v380 = vadd.f32 0.0, %v379
        %v381 = vpop.f32.mrf.mxu0
        %v382 = vadd.f32 0.0, %v381
        %383 = vmatmul.bf16.gmra.mxu0 %v322
        %v384 = vpop.f32.mrf.mxu0
        %v385 = vadd.f32 0.0, %v384
        %v386 = vpop.f32.mrf.mxu0
        %v387 = vadd.f32 0.0, %v386
        %388 = vmatmul.bf16.gmra.mxu0 %v325
        %v389 = vpop.f32.mrf.mxu0
        %v390 = vadd.f32 0.0, %v389
        %v391 = vpop.f32.mrf.mxu0
        %v392 = vadd.f32 0.0, %v391
        %393 = vmatmul.bf16.gmra.mxu0 %v328
        %v394 = vpop.f32.mrf.mxu0
        %v395 = vadd.f32 0.0, %v394
        %v396 = vpop.f32.mrf.mxu0
        %v397 = vadd.f32 0.0, %v396
        %398 = vmatmul.bf16.gmra.mxu0 %v331
        %v399 = vpop.f32.mrf.mxu0
        %v400 = vadd.f32 0.0, %v399
        %v401 = vpop.f32.mrf.mxu0
        %v402 = vadd.f32 0.0, %v401
        %403 = vmatmul.bf16.gmra.mxu0 %v334
        %v404 = vpop.f32.mrf.mxu0
        %v405 = vadd.f32 0.0, %v404
        %v406 = vpop.f32.mrf.mxu0
        %v407 = vadd.f32 0.0, %v406
        %408 = vmatmul.bf16.gmra.mxu0 %v337
        %v409 = vpop.f32.mrf.mxu0
        %v410 = vadd.f32 0.0, %v409
        %v411 = vpop.f32.mrf.mxu0
        %v412 = vadd.f32 0.0, %v411
        %413 = vmatmul.bf16.gmra.mxu0 %v340
        %v414 = vpop.f32.mrf.mxu0
        %v415 = vadd.f32 0.0, %v414
        %v416 = vpop.f32.mrf.mxu0
        %v417 = vadd.f32 0.0, %v416
        %418 = vmatmul.bf16.gmra.mxu0 %v343
        %v419 = vpop.f32.mrf.mxu0
        %v420 = vadd.f32 0.0, %v419
        %v421 = vpop.f32.mrf.mxu0
        %v422 = vadd.f32 0.0, %v421
        %423 = vmatmul.bf16.gmra.mxu0 %v346
        %v424 = vpop.f32.mrf.mxu0
        %v425 = vadd.f32 0.0, %v424
        %v426 = vpop.f32.mrf.mxu0
        %v427 = vadd.f32 0.0, %v426
        %428 = vmatmul.bf16.gmra.mxu0 %v349
        %v429 = vpop.f32.mrf.mxu0
        %v430 = vadd.f32 0.0, %v429
        %v431 = vpop.f32.mrf.mxu0
        %v432 = vadd.f32 0.0, %v431
        %433 = vmatmul.bf16.gmra.mxu0 %v352
        %v434 = vpop.f32.mrf.mxu0
        %v435 = vadd.f32 0.0, %v434
        %v436 = vpop.f32.mrf.mxu0
        %v437 = vadd.f32 0.0, %v436
        %438 = vmatmul.bf16.gmra.mxu0 %v355
        %v439 = vpop.f32.mrf.mxu0
        %v440 = vadd.f32 0.0, %v439
        %v441 = vpop.f32.mrf.mxu0
        %v442 = vadd.f32 0.0, %v441
        %443 = vmatmul.bf16.gmra.mxu0 %v358
        %v444 = vpop.f32.mrf.mxu0
        %v445 = vadd.f32 0.0, %v444
        %v446 = vpop.f32.mrf.mxu0
        %v447 = vadd.f32 0.0, %v446
        %448 = vmatmul.bf16.gmra.mxu0 %v361
        %v449 = vpop.f32.mrf.mxu0
        %v450 = vadd.f32 0.0, %v449
        %v451 = vpop.f32.mrf.mxu0
        %v452 = vadd.f32 0.0, %v451
        %453 = vmatmul.bf16.gmra.mxu0 %v364
        %v454 = vpop.f32.mrf.mxu0
        %v455 = vadd.f32 0.0, %v454
        %v456 = vpop.f32.mrf.mxu0
        %v457 = vadd.f32 0.0, %v456
        %458 = vdwg.mxu0
        %s459 = scalar_lea.vmem %s276, %s25
        %v460 = vld [vmem:[%s459] sm:$0x1]
        %s461 = scalar_lea.vmem %s280, %s25
        %v462 = vld [vmem:[%s461] sm:$0x1]
        %v463 = vperm.slane %v460, 0
        %v464 = vmul.f32 %v380, %v463
        %v465 = vmul.f32 %v382, %v463
        %v466 = vmul.f32 %v385, %v463
        %v467 = vmul.f32 %v387, %v463
        %v468 = vmul.f32 %v390, %v463
        %v469 = vmul.f32 %v392, %v463
        %v470 = vmul.f32 %v395, %v463
        %v471 = vmul.f32 %v397, %v463
        %v472 = vmul.f32 %v400, %v463
        %v473 = vmul.f32 %v402, %v463
        %v474 = vmul.f32 %v405, %v463
        %v475 = vmul.f32 %v407, %v463
        %v476 = vmul.f32 %v410, %v463
        %v477 = vmul.f32 %v412, %v463
        %v478 = vmul.f32 %v415, %v463
        %v479 = vmul.f32 %v417, %v463
        %v480 = vmul.f32 %v420, %v463
        %v481 = vmul.f32 %v422, %v463
        %v482 = vmul.f32 %v425, %v463
        %v483 = vmul.f32 %v427, %v463
        %v484 = vmul.f32 %v430, %v463
        %v485 = vmul.f32 %v432, %v463
        %v486 = vmul.f32 %v435, %v463
        %v487 = vmul.f32 %v437, %v463
        %v488 = vmul.f32 %v440, %v463
        %v489 = vmul.f32 %v442, %v463
        %v490 = vmul.f32 %v445, %v463
        %v491 = vmul.f32 %v447, %v463
        %v492 = vmul.f32 %v450, %v463
        %v493 = vmul.f32 %v452, %v463
        %v494 = vmul.f32 %v455, %v463
        %v495 = vmul.f32 %v457, %v463
        %v496 = vperm.slane %v462, 0
        %v497 = vadd.f32 %v464, %v496
        %v498 = vadd.f32 %v465, %v496
        %v499 = vadd.f32 %v466, %v496
        %v500 = vadd.f32 %v467, %v496
        %v501 = vadd.f32 %v468, %v496
        %v502 = vadd.f32 %v469, %v496
        %v503 = vadd.f32 %v470, %v496
        %v504 = vadd.f32 %v471, %v496
        %v505 = vadd.f32 %v472, %v496
        %v506 = vadd.f32 %v473, %v496
        %v507 = vadd.f32 %v474, %v496
        %v508 = vadd.f32 %v475, %v496
        %v509 = vadd.f32 %v476, %v496
        %v510 = vadd.f32 %v477, %v496
        %v511 = vadd.f32 %v478, %v496
        %v512 = vadd.f32 %v479, %v496
        %v513 = vadd.f32 %v480, %v496
        %v514 = vadd.f32 %v481, %v496
        %v515 = vadd.f32 %v482, %v496
        %v516 = vadd.f32 %v483, %v496
        %v517 = vadd.f32 %v484, %v496
        %v518 = vadd.f32 %v485, %v496
        %v519 = vadd.f32 %v486, %v496
        %v520 = vadd.f32 %v487, %v496
        %v521 = vadd.f32 %v488, %v496
        %v522 = vadd.f32 %v489, %v496
        %v523 = vadd.f32 %v490, %v496
        %v524 = vadd.f32 %v491, %v496
        %v525 = vadd.f32 %v492, %v496
        %v526 = vadd.f32 %v493, %v496
        %v527 = vadd.f32 %v494, %v496
        %v528 = vadd.f32 %v495, %v496
        %p529 = scmp.eq.s32.totalorder %s25, 0
        // Predicated region
        $region37: #{input_proj_gn_tmax.3} parent=35 // pred_check
          %p530 = pneg %p529
        $region38: #{input_proj_gn_tmax.3} parent=35 // pred_check_branch
          %532 = sbr.rel (%p530) target = $region40
        $region39: #{input_proj_gn_tmax.3} parent=35 // pred_region
          %533 = vst [vmem:[%s258] sm:$0xff] %v497
          %534 = vst [vmem:[%s258 + $0x8] sm:$0xff] %v498
          %535 = vst [vmem:[%s258 + $0x10] sm:$0xff] %v499
          %536 = vst [vmem:[%s258 + $0x18] sm:$0xff] %v500
          %537 = vst [vmem:[%s258 + $0x20] sm:$0xff] %v501
          %538 = vst [vmem:[%s258 + $0x28] sm:$0xff] %v502
          %539 = vst [vmem:[%s258 + $0x30] sm:$0xff] %v503
          %540 = vst [vmem:[%s258 + $0x38] sm:$0xff] %v504
          %541 = vst [vmem:[%s258 + $0x40] sm:$0xff] %v505
          %542 = vst [vmem:[%s258 + $0x48] sm:$0xff] %v506
          %543 = vst [vmem:[%s258 + $0x50] sm:$0xff] %v507
          %544 = vst [vmem:[%s258 + $0x58] sm:$0xff] %v508
          %545 = vst [vmem:[%s258 + $0x60] sm:$0xff] %v509
          %546 = vst [vmem:[%s258 + $0x68] sm:$0xff] %v510
          %547 = vst [vmem:[%s258 + $0x70] sm:$0xff] %v511
          %548 = vst [vmem:[%s258 + $0x78] sm:$0xff] %v512
          %549 = vst [vmem:[%s258 + $0x80] sm:$0xff] %v513
          %550 = vst [vmem:[%s258 + $0x88] sm:$0xff] %v514
          %551 = vst [vmem:[%s258 + $0x90] sm:$0xff] %v515
          %552 = vst [vmem:[%s258 + $0x98] sm:$0xff] %v516
          %553 = vst [vmem:[%s258 + $0xa0] sm:$0xff] %v517
          %554 = vst [vmem:[%s258 + $0xa8] sm:$0xff] %v518
          %555 = vst [vmem:[%s258 + $0xb0] sm:$0xff] %v519
          %556 = vst [vmem:[%s258 + $0xb8] sm:$0xff] %v520
          %557 = vst [vmem:[%s258 + $0xc0] sm:$0xff] %v521
          %558 = vst [vmem:[%s258 + $0xc8] sm:$0xff] %v522
          %559 = vst [vmem:[%s258 + $0xd0] sm:$0xff] %v523
          %560 = vst [vmem:[%s258 + $0xd8] sm:$0xff] %v524
          %561 = vst [vmem:[%s258 + $0xe0] sm:$0xff] %v525
          %562 = vst [vmem:[%s258 + $0xe8] sm:$0xff] %v526
          %563 = vst [vmem:[%s258 + $0xf0] sm:$0xff] %v527
          %564 = vst [vmem:[%s258 + $0xf8] sm:$0xff] %v528
        $region40: #{input_proj_gn_tmax.3} parent=35 // pred_fallthru
          _
        %p565 = scmp.ne.s32.totalorder %s25, 0
        // Predicated region
        $region41: #{input_proj_gn_tmax.3} parent=35 // pred_check
          %p566 = pneg %p565
        $region42: #{input_proj_gn_tmax.3} parent=35 // pred_check_branch
          %568 = sbr.rel (%p566) target = $region44
        $region43: #{input_proj_gn_tmax.3} parent=35 // pred_region
          %v569 = vld [vmem:[%s258] sm:$0xff]
          %v570 = vld [vmem:[%s258 + $0x8] sm:$0xff]
          %v571 = vld [vmem:[%s258 + $0x10] sm:$0xff]
          %v572 = vld [vmem:[%s258 + $0x18] sm:$0xff]
          %v573 = vld [vmem:[%s258 + $0x20] sm:$0xff]
          %v574 = vld [vmem:[%s258 + $0x28] sm:$0xff]
          %v575 = vld [vmem:[%s258 + $0x30] sm:$0xff]
          %v576 = vld [vmem:[%s258 + $0x38] sm:$0xff]
          %v577 = vld [vmem:[%s258 + $0x40] sm:$0xff]
          %v578 = vld [vmem:[%s258 + $0x48] sm:$0xff]
          %v579 = vld [vmem:[%s258 + $0x50] sm:$0xff]
          %v580 = vld [vmem:[%s258 + $0x58] sm:$0xff]
          %v581 = vld [vmem:[%s258 + $0x60] sm:$0xff]
          %v582 = vld [vmem:[%s258 + $0x68] sm:$0xff]
          %v583 = vld [vmem:[%s258 + $0x70] sm:$0xff]
          %v584 = vld [vmem:[%s258 + $0x78] sm:$0xff]
          %v585 = vld [vmem:[%s258 + $0x80] sm:$0xff]
          %v586 = vld [vmem:[%s258 + $0x88] sm:$0xff]
          %v587 = vld [vmem:[%s258 + $0x90] sm:$0xff]
          %v588 = vld [vmem:[%s258 + $0x98] sm:$0xff]
          %v589 = vld [vmem:[%s258 + $0xa0] sm:$0xff]
          %v590 = vld [vmem:[%s258 + $0xa8] sm:$0xff]
          %v591 = vld [vmem:[%s258 + $0xb0] sm:$0xff]
          %v592 = vld [vmem:[%s258 + $0xb8] sm:$0xff]
          %v593 = vld [vmem:[%s258 + $0xc0] sm:$0xff]
          %v594 = vld [vmem:[%s258 + $0xc8] sm:$0xff]
          %v595 = vld [vmem:[%s258 + $0xd0] sm:$0xff]
          %v596 = vld [vmem:[%s258 + $0xd8] sm:$0xff]
          %v597 = vld [vmem:[%s258 + $0xe0] sm:$0xff]
          %v598 = vld [vmem:[%s258 + $0xe8] sm:$0xff]
          %v599 = vld [vmem:[%s258 + $0xf0] sm:$0xff]
          %v600 = vld [vmem:[%s258 + $0xf8] sm:$0xff]
          %v601 = vmax.f32 %v569, %v497
          %v602 = vmax.f32 %v570, %v498
          %v603 = vmax.f32 %v571, %v499
          %v604 = vmax.f32 %v572, %v500
          %v605 = vmax.f32 %v573, %v501
          %v606 = vmax.f32 %v574, %v502
          %v607 = vmax.f32 %v575, %v503
          %v608 = vmax.f32 %v576, %v504
          %v609 = vmax.f32 %v577, %v505
          %v610 = vmax.f32 %v578, %v506
          %v611 = vmax.f32 %v579, %v507
          %v612 = vmax.f32 %v580, %v508
          %v613 = vmax.f32 %v581, %v509
          %v614 = vmax.f32 %v582, %v510
          %v615 = vmax.f32 %v583, %v511
          %v616 = vmax.f32 %v584, %v512
          %v617 = vmax.f32 %v585, %v513
          %v618 = vmax.f32 %v586, %v514
          %v619 = vmax.f32 %v587, %v515
          %v620 = vmax.f32 %v588, %v516
          %v621 = vmax.f32 %v589, %v517
          %v622 = vmax.f32 %v590, %v518
          %v623 = vmax.f32 %v591, %v519
          %v624 = vmax.f32 %v592, %v520
          %v625 = vmax.f32 %v593, %v521
          %v626 = vmax.f32 %v594, %v522
          %v627 = vmax.f32 %v595, %v523
          %v628 = vmax.f32 %v596, %v524
          %v629 = vmax.f32 %v597, %v525
          %v630 = vmax.f32 %v598, %v526
          %v631 = vmax.f32 %v599, %v527
          %v632 = vmax.f32 %v600, %v528
          %633 = vst [vmem:[%s258] sm:$0xff] %v601
          %634 = vst [vmem:[%s258 + $0x8] sm:$0xff] %v602
          %635 = vst [vmem:[%s258 + $0x10] sm:$0xff] %v603
          %636 = vst [vmem:[%s258 + $0x18] sm:$0xff] %v604
          %637 = vst [vmem:[%s258 + $0x20] sm:$0xff] %v605
          %638 = vst [vmem:[%s258 + $0x28] sm:$0xff] %v606
          %639 = vst [vmem:[%s258 + $0x30] sm:$0xff] %v607
          %640 = vst [vmem:[%s258 + $0x38] sm:$0xff] %v608
          %641 = vst [vmem:[%s258 + $0x40] sm:$0xff] %v609
          %642 = vst [vmem:[%s258 + $0x48] sm:$0xff] %v610
          %643 = vst [vmem:[%s258 + $0x50] sm:$0xff] %v611
          %644 = vst [vmem:[%s258 + $0x58] sm:$0xff] %v612
          %645 = vst [vmem:[%s258 + $0x60] sm:$0xff] %v613
          %646 = vst [vmem:[%s258 + $0x68] sm:$0xff] %v614
          %647 = vst [vmem:[%s258 + $0x70] sm:$0xff] %v615
          %648 = vst [vmem:[%s258 + $0x78] sm:$0xff] %v616
          %649 = vst [vmem:[%s258 + $0x80] sm:$0xff] %v617
          %650 = vst [vmem:[%s258 + $0x88] sm:$0xff] %v618
          %651 = vst [vmem:[%s258 + $0x90] sm:$0xff] %v619
          %652 = vst [vmem:[%s258 + $0x98] sm:$0xff] %v620
          %653 = vst [vmem:[%s258 + $0xa0] sm:$0xff] %v621
          %654 = vst [vmem:[%s258 + $0xa8] sm:$0xff] %v622
          %655 = vst [vmem:[%s258 + $0xb0] sm:$0xff] %v623
          %656 = vst [vmem:[%s258 + $0xb8] sm:$0xff] %v624
          %657 = vst [vmem:[%s258 + $0xc0] sm:$0xff] %v625
          %658 = vst [vmem:[%s258 + $0xc8] sm:$0xff] %v626
          %659 = vst [vmem:[%s258 + $0xd0] sm:$0xff] %v627
          %660 = vst [vmem:[%s258 + $0xd8] sm:$0xff] %v628
          %661 = vst [vmem:[%s258 + $0xe0] sm:$0xff] %v629
          %662 = vst [vmem:[%s258 + $0xe8] sm:$0xff] %v630
          %663 = vst [vmem:[%s258 + $0xf0] sm:$0xff] %v631
          %664 = vst [vmem:[%s258 + $0xf8] sm:$0xff] %v632
        $region44: #{input_proj_gn_tmax.3} parent=35 // pred_fallthru
          _
        %s665 = sand.u32 %s152, 1
        %s666 = scalar_lea.sflag [#allocation3], %s665
        %s667 = sand.u32 %s152, 1
        %s668 = smul.addr %s667, 256
        %s669 = scalar_lea.vmem [#allocation2], %s668
        // Predicated region
        $region45: #{input_proj_gn_tmax.3} parent=35 // pred_check
          %p670 = pneg %p162
        $region46: #{input_proj_gn_tmax.3} parent=35 // pred_check_branch
          %672 = sbr.rel (%p670) target = $region48
        $region47: #{input_proj_gn_tmax.3} parent=35 // pred_region
          %s673 = smul.u32 32, %s24
          %675 = vsyncadd %s666, 0
          %s676 = smul.addr %s23, 32
          %s677 = sadd.s32 %s673, %s676
          %s678 = smul.addr %s677, 8
          %s679 = scalar_lea.hbm %s4, %s678
          %s680 = sshll.u32 %s669, 4
          %s681 = int_to_ptr.vmem [resolvable:$true] %s680
          %s682 = sshll.u32 %s679, 4
          %s683 = int_to_ptr.hbm [resolvable:$true] %s682
          %688 = dma.vmem_to_hbm [thread:$0]  %s681, 4096, %s683, %s666, 128, 128, 8
        $region48: #{input_proj_gn_tmax.3} parent=35 // pred_fallthru
          _
      $region36: #{input_proj_gn_tmax.3} parent=5 // pred_fallthru
        _
      %p689 = scmp.le.s32.totalorder 2, %s13
      // Predicated region
      $region49: #{input_proj_gn_tmax.3} parent=5 // pred_check
        %p690 = pneg %p689
      $region50: #{input_proj_gn_tmax.3} parent=5 // pred_check_branch
        %692 = sbr.rel (%p690) target = $region52
      $region51: #{input_proj_gn_tmax.3} parent=5 // pred_region
        %s693 = ssub.s32 %s13, 2
        // Predicated region
        $region53: #{input_proj_gn_tmax.3} parent=51 // pred_check
          %p694 = pneg %p168
        $region54: #{input_proj_gn_tmax.3} parent=51 // pred_check_branch
          %696 = sbr.rel (%p694) target = $region56
        $region55: #{input_proj_gn_tmax.3} parent=51 // pred_region
          %s697 = sand.u32 %s153, 1
          %s698 = scalar_lea.sflag [#allocation3], %s697
          %s699 = sand.u32 %s153, 1
          %s700 = smul.addr %s699, 256
          %s701 = scalar_lea.vmem [#allocation2], %s700
          %703 = dma.done %s698, 4096
        $region56: #{input_proj_gn_tmax.3} parent=51 // pred_fallthru
          _
      $region52: #{input_proj_gn_tmax.3} parent=5 // pred_fallthru
        _
    $region6: #{input_proj_gn_tmax.3} parent=1 // loop_footer
      %s17 = sadd.s32 1, %s13
    $region7: #{input_proj_gn_tmax.3} parent=1 // loop_footer_branch
      %12 = sbr.rel target = $region3
    $region8: #{input_proj_gn_tmax.3} parent=1 // loop_exit
      _
    %704 = vsyncpa [#allocation3], 1
    %s705 = scalar_lea.sflag [#allocation3], 1
    %706 = vsyncpa %s705, 1

</llo_original>
